<compile_context>
chip_gen: v7x
topology: tpu7x:2x2x1
jax: 0.10.0
libtpu: 0.0.40
codegen_flags: <defaults>
</compile_context>

<pallas_src>
import functools
import math

import jax
import jax.numpy as jnp
import numpy as np
from jax import lax
from jax.experimental import pallas as pl
from jax.experimental.pallas import tpu as pltpu

# ----------------------------- tiny BERT config ------------------------------
VOCAB = 100
HIDDEN = 32
N_HEADS = 2
HEAD_DIM = HIDDEN // N_HEADS
N_LAYERS = 2
INTERMEDIATE = 64
MAX_POS = 16
LN_EPS = 1e-12
MASK_BIAS = -10000.0   # classic BERT extended-attention-mask bias

# ------------------------- packed weight-slab layout --------------------------
# One (WSLAB_ROWS, 128) f32 slab holds every parameter.  All matrix blocks start
# at multiple-of-8 rows (sublane aligned) and column 0 (lane aligned).
LANES = 128
EMB_ROWS = 8                               # row 0: emb LN gain, row 1: emb LN bias
OFF_WQKV = 0                               # (HIDDEN, 3*HIDDEN)  cols 0:96
OFF_WO = OFF_WQKV + HIDDEN                 # (HIDDEN, HIDDEN)    rows grouped by head
OFF_W1 = OFF_WO + HIDDEN                   # (HIDDEN, INTERMEDIATE)
OFF_W2 = OFF_W1 + HIDDEN                   # (INTERMEDIATE, HIDDEN)
OFF_VEC = OFF_W2 + INTERMEDIATE            # 8 single-row vectors, see below
LAYER_ROWS = OFF_VEC + 8
WSLAB_ROWS = EMB_ROWS + N_LAYERS * LAYER_ROWS       # = 344
# vector-block rows: 0 bqkv | 1 bo | 2 ln1_g | 3 ln1_b | 4 b1 | 5 b2 | 6 ln2_g | 7 ln2_b


def _ln(x, g, b):
    mean = jnp.mean(x, axis=-1, keepdims=True)
    var = jnp.mean((x - mean) ** 2, axis=-1, keepdims=True)
    return (x - mean) * lax.rsqrt(var + LN_EPS) * g + b


# --------------------------------- fused kernel -------------------------------
def bert_fused_kernel(x_ref, mask_ref, w_ref, out_ref, *, batch, seq, pooling):
    n = batch * seq
    scale = 1.0 / math.sqrt(HEAD_DIM)

    # Embedding LayerNorm over the full (B*S, H) slab.
    x = _ln(x_ref[...], w_ref[0:1, :HIDDEN], w_ref[1:2, :HIDDEN])        # (B*S, H)

    # Additive attention bias over the full (B*S, B*S) score matrix:
    # -1e4 on padded keys (from the mask) and on cross-batch (q, k) pairs.
    # Those entries underflow to exactly 0 after softmax, so one (B*S, B*S)
    # attention per head replaces the per-(batch, head) loop of the old kernel.
    mask_flat = mask_ref[...]                                            # (1, B*S)
    key_bias = (1.0 - mask_flat) * MASK_BIAS                             # (1, B*S)
    iq = lax.broadcasted_iota(jnp.int32, (n, n), 0)
    ik = lax.broadcasted_iota(jnp.int32, (n, n), 1)
    same_batch = None
    for b in range(batch):                 # built with compares only (no int div)
        in_q = jnp.logical_and(iq >= b * seq, iq < (b + 1) * seq)
        in_k = jnp.logical_and(ik >= b * seq, ik < (b + 1) * seq)
        blk = jnp.logical_and(in_q, in_k).astype(jnp.float32)
        same_batch = blk if same_batch is None else same_batch + blk
    attn_bias = key_bias + (1.0 - same_batch) * MASK_BIAS                # (B*S, B*S)

    for layer in range(N_LAYERS):
        base = EMB_ROWS + layer * LAYER_ROWS
        vec = base + OFF_VEC

        # ---- fused QKV projection over the whole slab (one matmul) ----------
        qkv = (jnp.dot(x, w_ref[base + OFF_WQKV:base + OFF_WQKV + HIDDEN, :3 * HIDDEN],
                       preferred_element_type=jnp.float32)
               + w_ref[vec + 0:vec + 1, :3 * HIDDEN])                    # (B*S, 3H)

        # ---- per-head attention over all B*S rows at once --------------------
        attn = None
        for h in range(N_HEADS):
            c0 = h * HEAD_DIM
            q = qkv[:, c0:c0 + HEAD_DIM]
            k = qkv[:, HIDDEN + c0:HIDDEN + c0 + HEAD_DIM]
            v = qkv[:, 2 * HIDDEN + c0:2 * HIDDEN + c0 + HEAD_DIM]
            # Contract HEAD_DIM directly -> no explicit k.T transpose.
            s = lax.dot_general(q, k, (((1,), (1,)), ((), ())),
                                preferred_element_type=jnp.float32) * scale + attn_bias
            m = jnp.max(s, axis=-1, keepdims=True)
            p = jnp.exp(s - m)
            p = p / jnp.sum(p, axis=-1, keepdims=True)     # exact div (1e-4 parity)
            ctx = jnp.dot(p, v, preferred_element_type=jnp.float32)       # (B*S, HD)
            # Per-head output projection accumulated directly (no concat/scratch).
            wo_h = w_ref[base + OFF_WO + c0:base + OFF_WO + c0 + HEAD_DIM, :HIDDEN]
            part = jnp.dot(ctx, wo_h, preferred_element_type=jnp.float32)
            attn = part if attn is None else attn + part
        attn = attn + w_ref[vec + 1:vec + 2, :HIDDEN]
        h1 = _ln(x + attn, w_ref[vec + 2:vec + 3, :HIDDEN], w_ref[vec + 3:vec + 4, :HIDDEN])

        # ---- feed-forward on the full slab -----------------------------------
        ff = (jnp.dot(h1, w_ref[base + OFF_W1:base + OFF_W1 + HIDDEN, :INTERMEDIATE],
                      preferred_element_type=jnp.float32)
              + w_ref[vec + 4:vec + 5, :INTERMEDIATE])
        # TODO(synk): HF BERT uses exact (erf) GELU; tanh approximation used here.
        ff = jax.nn.gelu(ff, approximate=True)
        ff = (jnp.dot(ff, w_ref[base + OFF_W2:base + OFF_W2 + INTERMEDIATE, :HIDDEN],
                      preferred_element_type=jnp.float32)
              + w_ref[vec + 5:vec + 6, :HIDDEN])
        x = _ln(h1 + ff, w_ref[vec + 6:vec + 7, :HIDDEN], w_ref[vec + 7:vec + 8, :HIDDEN])

    # ---- pooling as ONE (B, B*S) selection-matrix matmul ----------------------
    row = lax.broadcasted_iota(jnp.int32, (batch, n), 0)
    col = lax.broadcasted_iota(jnp.int32, (batch, n), 1)
    lo = row * seq
    if pooling == "cls":
        sel = (col == lo).astype(jnp.float32)                             # one-hot CLS
    else:  # mean over valid tokens
        in_batch = jnp.logical_and(col >= lo, col < lo + seq).astype(jnp.float32)
        sel = in_batch * mask_flat                                        # (B, B*S)
        denom = jnp.maximum(jnp.sum(sel, axis=-1, keepdims=True), 1e-9)
        sel = sel / denom
    pooled = jnp.dot(sel, x, preferred_element_type=jnp.float32)          # (B, H)
    out_ref[...] = pooled.astype(out_ref.dtype)


# ------------------------------ weight packing --------------------------------
def pack_weight_slab(params):
    """Pack every parameter into one (WSLAB_ROWS, 128) f32 slab (single DMA)."""
    def cat_heads(w):                       # (NH, r, HD) -> (r, NH*HD)
        return jnp.concatenate([w[h] for h in range(N_HEADS)], axis=1)

    def put(s, row, arr):
        arr = jnp.asarray(arr, jnp.float32)
        return s.at[row:row + arr.shape[0], :arr.shape[1]].set(arr)

    slab = jnp.zeros((WSLAB_ROWS, LANES), jnp.float32)
    slab = put(slab, 0, params["emb_ln_g"])
    slab = put(slab, 1, params["emb_ln_b"])
    for l, lw in enumerate(params["layers"]):
        base = EMB_ROWS + l * LAYER_ROWS
        wqkv = jnp.concatenate([cat_heads(lw["wq"]), cat_heads(lw["wk"]),
                                cat_heads(lw["wv"])], axis=1)             # (H, 3H)
        bqkv = jnp.concatenate([cat_heads(lw["bq"]), cat_heads(lw["bk"]),
                                cat_heads(lw["bv"])], axis=1)             # (1, 3H)
        slab = put(slab, base + OFF_WQKV, wqkv)
        slab = put(slab, base + OFF_WO, lw["wo"].reshape(HIDDEN, HIDDEN))  # heads on rows
        slab = put(slab, base + OFF_W1, lw["w1"])
        slab = put(slab, base + OFF_W2, lw["w2"])
        vec = base + OFF_VEC
        slab = put(slab, vec + 0, bqkv)
        slab = put(slab, vec + 1, lw["bo"])
        slab = put(slab, vec + 2, lw["ln1_g"])
        slab = put(slab, vec + 3, lw["ln1_b"])
        slab = put(slab, vec + 4, lw["b1"])
        slab = put(slab, vec + 5, lw["b2"])
        slab = put(slab, vec + 6, lw["ln2_g"])
        slab = put(slab, vec + 7, lw["ln2_b"])
    return slab


# -------------------------------- wrapper --------------------------------------
def bert_dense_retrieval_forward(params, input_ids, attention_mask, pooling="cls"):
    """Equivalent of BertDenseRetrieval.forward -> (B, H) embeddings."""
    B, S = input_ids.shape
    n = B * S
    # Embedding gather (word + pos + type) stays as plain-JAX glue; token_type_ids == 0.
    x = (params["word_emb"][input_ids]
         + params["pos_emb"][:S][None, :, :]
         + params["type_emb"][0][None, None, :]).astype(jnp.float32)
    x = x.reshape(n, HIDDEN)                                # lane/sublane-dense slab
    mask_flat = attention_mask.astype(jnp.float32).reshape(1, n)
    wslab = pack_weight_slab(params)                        # single weight input

    # Rough cost hint for XLA's scheduler around the custom call.
    flops_layer = (2 * n * HIDDEN * 3 * HIDDEN                     # fused QKV
                   + N_HEADS * (4 * n * n * HEAD_DIM               # scores + context
                                + 2 * n * HEAD_DIM * HIDDEN)       # per-head out proj
                   + 4 * n * HIDDEN * INTERMEDIATE)                # FFN
    flops = N_LAYERS * flops_layer + 2 * B * n * HIDDEN            # + pooling matmul
    transcendentals = (N_LAYERS * (N_HEADS * n * n + n * INTERMEDIATE)
                       + (2 * N_LAYERS + 1) * n)
    bytes_accessed = 4 * (x.size + mask_flat.size + wslab.size + B * HIDDEN)

    kernel = functools.partial(bert_fused_kernel, batch=B, seq=S, pooling=pooling)
    vmem = functools.partial(pl.BlockSpec, memory_space=pltpu.MemorySpace.VMEM)
    # TODO(synk): at realistic B*S / hidden sizes, make the batch a parallel grid
    # axis (uses the 2nd TensorCore on v7x) and pipeline per-layer bf16 weights;
    # pointless at this toy size, so the call stays gridless.
    return pl.pallas_call(
        kernel,
        out_shape=jax.ShapeDtypeStruct((B, HIDDEN), jnp.float32),
        in_specs=[vmem(), vmem(), vmem()],
        out_specs=vmem(),
        cost_estimate=pl.CostEstimate(flops=int(flops),
                                      transcendentals=int(transcendentals),
                                      bytes_accessed=int(bytes_accessed)),
    )(x, mask_flat, wslab)


# -------------------------- pure-JAX reference check --------------------------
def reference_forward(params, input_ids, attention_mask, pooling="cls"):
    B, S = input_ids.shape
    x = (params["word_emb"][input_ids]
         + params["pos_emb"][:S][None, :, :]
         + params["type_emb"][0][None, None, :]).astype(jnp.float32)
    x = _ln(x, params["emb_ln_g"], params["emb_ln_b"])
    mask_f = attention_mask.astype(jnp.float32)
    mask_bias = (1.0 - mask_f)[:, None, :] * MASK_BIAS
    for lw in params["layers"]:
        attn = jnp.zeros_like(x)
        for h in range(N_HEADS):
            q = x @ lw["wq"][h] + lw["bq"][h]
            k = x @ lw["wk"][h] + lw["bk"][h]
            v = x @ lw["wv"][h] + lw["bv"][h]
            scores = jnp.einsum("bqd,bkd->bqk", q, k) / math.sqrt(HEAD_DIM) + mask_bias
            p = jax.nn.softmax(scores, axis=-1)
            ctx = jnp.einsum("bqk,bkd->bqd", p, v)
            attn = attn + ctx @ lw["wo"][h]
        attn = attn + lw["bo"]
        h1 = _ln(x + attn, lw["ln1_g"], lw["ln1_b"])
        ff = jax.nn.gelu(h1 @ lw["w1"] + lw["b1"], approximate=True)
        ff = ff @ lw["w2"] + lw["b2"]
        x = _ln(h1 + ff, lw["ln2_g"], lw["ln2_b"])
    if pooling == "cls":
        return x[:, 0]
    expanded = mask_f[:, :, None]
    return jnp.sum(x * expanded, axis=1) / jnp.maximum(jnp.sum(expanded, axis=1), 1e-9)


# ------------------------------ parameter init --------------------------------
def init_params(key):
    kit = iter(jax.random.split(key, 8 + 16 * N_LAYERS))

    def nrm(shape):
        return (0.02 * jax.random.normal(next(kit), shape)).astype(jnp.float32)

    params = {
        "word_emb": nrm((VOCAB, HIDDEN)),
        "pos_emb": nrm((MAX_POS, HIDDEN)),
        "type_emb": nrm((2, HIDDEN)),
        "emb_ln_g": jnp.ones((1, HIDDEN), jnp.float32),
        "emb_ln_b": jnp.zeros((1, HIDDEN), jnp.float32),
        "layers": [],
    }
    for _ in range(N_LAYERS):
        lw = {
            "wq": nrm((N_HEADS, HIDDEN, HEAD_DIM)),
            "bq": nrm((N_HEADS, 1, HEAD_DIM)),
            "wk": nrm((N_HEADS, HIDDEN, HEAD_DIM)),
            "bk": nrm((N_HEADS, 1, HEAD_DIM)),
            "wv": nrm((N_HEADS, HIDDEN, HEAD_DIM)),
            "bv": nrm((N_HEADS, 1, HEAD_DIM)),
            "wo": nrm((N_HEADS, HEAD_DIM, HIDDEN)),
            "bo": nrm((1, HIDDEN)),
            "ln1_g": jnp.ones((1, HIDDEN), jnp.float32),
            "ln1_b": jnp.zeros((1, HIDDEN), jnp.float32),
            "w1": nrm((HIDDEN, INTERMEDIATE)),
            "b1": nrm((1, INTERMEDIATE)),
            "w2": nrm((INTERMEDIATE, HIDDEN)),
            "b2": nrm((1, HIDDEN)),
            "ln2_g": jnp.ones((1, HIDDEN), jnp.float32),
            "ln2_b": jnp.zeros((1, HIDDEN), jnp.float32),
        }
        params["layers"].append(lw)
    return params


# ----------------------------------- main -------------------------------------
if __name__ == "__main__":
    key = jax.random.PRNGKey(0)
    pkey, ikey = jax.random.split(key)
    params = init_params(pkey)

    B, S = 2, 8
    input_ids = jax.random.randint(ikey, (B, S), 0, VOCAB, dtype=jnp.int32)
    attention_mask = jnp.array([[1, 1, 1, 1, 1, 1, 1, 1],
                                [1, 1, 1, 1, 1, 0, 0, 0]], dtype=jnp.float32)

    for pooling in ("cls", "mean"):
        emb = bert_dense_retrieval_forward(params, input_ids, attention_mask, pooling=pooling)
        emb = jax.block_until_ready(emb)
        ref = reference_forward(params, input_ids, attention_mask, pooling=pooling)
        np.testing.assert_allclose(np.asarray(emb), np.asarray(ref), rtol=1e-4, atol=1e-4)
        assert emb.shape == (B, HIDDEN)

    print("KERNEL_OK")
</pallas_src>

<mosaic_0001>
module attributes {stable_mosaic.version = 11 : i64} {
  func.func @bert_fused_kernel(%arg0: memref<16x32xf32, #tpu.memory_space<vmem>>, %arg1: memref<1x16xf32, #tpu.memory_space<vmem>>, %arg2: memref<344x128xf32, #tpu.memory_space<vmem>>, %arg3: memref<2x32xf32, #tpu.memory_space<vmem>>) attributes {dimension_semantics = [], scalar_prefetch = 0 : i64, scratch_operands = 0 : i64, tpu.core_type = #tpu.core_type<tc>} {
    %c0 = arith.constant 0 : index
    %c0_0 = arith.constant 0 : index
    %0 = vector.load %arg0[%c0, %c0_0] : memref<16x32xf32, #tpu.memory_space<vmem>>, vector<16x32xf32>
    %c0_1 = arith.constant 0 : index
    %c0_2 = arith.constant 0 : index
    %1 = vector.load %arg2[%c0_1, %c0_2] : memref<344x128xf32, #tpu.memory_space<vmem>>, vector<1x32xf32>
    %c1 = arith.constant 1 : index
    %c0_3 = arith.constant 0 : index
    %2 = vector.load %arg2[%c1, %c0_3] : memref<344x128xf32, #tpu.memory_space<vmem>>, vector<1x32xf32>
    %cst = arith.constant dense<0.000000e+00> : vector<16xf32>
    %3 = vector.multi_reduction <add>, %0, %cst [1] : vector<16x32xf32> to vector<16xf32>
    %4 = vector.shape_cast %3 : vector<16xf32> to vector<16x1xf32>
    %cst_4 = arith.constant 3.200000e+01 : f32
    %5 = vector.broadcast %cst_4 : f32 to vector<16x1xf32>
    %6 = arith.divf %4, %5 : vector<16x1xf32>
    %7 = vector.broadcast %6 : vector<16x1xf32> to vector<16x32xf32>
    %8 = arith.subf %0, %7 : vector<16x32xf32>
    %9 = arith.mulf %8, %8 : vector<16x32xf32>
    %cst_5 = arith.constant dense<0.000000e+00> : vector<16xf32>
    %10 = vector.multi_reduction <add>, %9, %cst_5 [1] : vector<16x32xf32> to vector<16xf32>
    %11 = vector.shape_cast %10 : vector<16xf32> to vector<16x1xf32>
    %cst_6 = arith.constant 3.200000e+01 : f32
    %12 = vector.broadcast %cst_6 : f32 to vector<16x1xf32>
    %13 = arith.divf %11, %12 : vector<16x1xf32>
    %14 = vector.broadcast %6 : vector<16x1xf32> to vector<16x32xf32>
    %15 = arith.subf %0, %14 : vector<16x32xf32>
    %cst_7 = arith.constant 9.99999996E-13 : f32
    %16 = vector.broadcast %cst_7 : f32 to vector<16x1xf32>
    %17 = arith.addf %13, %16 : vector<16x1xf32>
    %18 = math.rsqrt %17 : vector<16x1xf32>
    %19 = vector.broadcast %18 : vector<16x1xf32> to vector<16x32xf32>
    %20 = arith.mulf %15, %19 : vector<16x32xf32>
    %21 = vector.broadcast %1 : vector<1x32xf32> to vector<16x32xf32>
    %22 = arith.mulf %20, %21 : vector<16x32xf32>
    %23 = vector.broadcast %2 : vector<1x32xf32> to vector<16x32xf32>
    %24 = arith.addf %22, %23 : vector<16x32xf32>
    %c0_8 = arith.constant 0 : index
    %c0_9 = arith.constant 0 : index
    %25 = vector.load %arg1[%c0_8, %c0_9] : memref<1x16xf32, #tpu.memory_space<vmem>>, vector<1x16xf32>
    %cst_10 = arith.constant 1.000000e+00 : f32
    %26 = vector.broadcast %cst_10 : f32 to vector<1x16xf32>
    %27 = arith.subf %26, %25 : vector<1x16xf32>
    %cst_11 = arith.constant -1.000000e+04 : f32
    %28 = vector.broadcast %cst_11 : f32 to vector<1x16xf32>
    %29 = arith.mulf %27, %28 : vector<1x16xf32>
    %30 = tpu.iota {dimensions = array<i32: 0>} : vector<16x16xi32>
    %31 = tpu.iota {dimensions = array<i32: 1>} : vector<16x16xi32>
    %c0_i32 = arith.constant 0 : i32
    %32 = vector.broadcast %c0_i32 : i32 to vector<16x16xi32>
    %33 = arith.cmpi sge, %30, %32 : vector<16x16xi32>
    %c8_i32 = arith.constant 8 : i32
    %34 = vector.broadcast %c8_i32 : i32 to vector<16x16xi32>
    %35 = arith.cmpi slt, %30, %34 : vector<16x16xi32>
    %36 = arith.andi %33, %35 : vector<16x16xi1>
    %c0_i32_12 = arith.constant 0 : i32
    %37 = vector.broadcast %c0_i32_12 : i32 to vector<16x16xi32>
    %38 = arith.cmpi sge, %31, %37 : vector<16x16xi32>
    %c8_i32_13 = arith.constant 8 : i32
    %39 = vector.broadcast %c8_i32_13 : i32 to vector<16x16xi32>
    %40 = arith.cmpi slt, %31, %39 : vector<16x16xi32>
    %41 = arith.andi %38, %40 : vector<16x16xi1>
    %42 = arith.andi %36, %41 : vector<16x16xi1>
    %43 = arith.extui %42 : vector<16x16xi1> to vector<16x16xi32>
    %44 = arith.sitofp %43 : vector<16x16xi32> to vector<16x16xf32>
    %c8_i32_14 = arith.constant 8 : i32
    %45 = vector.broadcast %c8_i32_14 : i32 to vector<16x16xi32>
    %46 = arith.cmpi sge, %30, %45 : vector<16x16xi32>
    %c16_i32 = arith.constant 16 : i32
    %47 = vector.broadcast %c16_i32 : i32 to vector<16x16xi32>
    %48 = arith.cmpi slt, %30, %47 : vector<16x16xi32>
    %49 = arith.andi %46, %48 : vector<16x16xi1>
    %c8_i32_15 = arith.constant 8 : i32
    %50 = vector.broadcast %c8_i32_15 : i32 to vector<16x16xi32>
    %51 = arith.cmpi sge, %31, %50 : vector<16x16xi32>
    %c16_i32_16 = arith.constant 16 : i32
    %52 = vector.broadcast %c16_i32_16 : i32 to vector<16x16xi32>
    %53 = arith.cmpi slt, %31, %52 : vector<16x16xi32>
    %54 = arith.andi %51, %53 : vector<16x16xi1>
    %55 = arith.andi %49, %54 : vector<16x16xi1>
    %56 = arith.extui %55 : vector<16x16xi1> to vector<16x16xi32>
    %57 = arith.sitofp %56 : vector<16x16xi32> to vector<16x16xf32>
    %58 = arith.addf %44, %57 : vector<16x16xf32>
    %cst_17 = arith.constant 1.000000e+00 : f32
    %59 = vector.broadcast %cst_17 : f32 to vector<16x16xf32>
    %60 = arith.subf %59, %58 : vector<16x16xf32>
    %cst_18 = arith.constant -1.000000e+04 : f32
    %61 = vector.broadcast %cst_18 : f32 to vector<16x16xf32>
    %62 = arith.mulf %60, %61 : vector<16x16xf32>
    %63 = vector.broadcast %29 : vector<1x16xf32> to vector<16x16xf32>
    %64 = arith.addf %63, %62 : vector<16x16xf32>
    %c8 = arith.constant 8 : index
    %c0_19 = arith.constant 0 : index
    %65 = vector.load %arg2[%c8, %c0_19] : memref<344x128xf32, #tpu.memory_space<vmem>>, vector<32x96xf32>
    %cst_20 = arith.constant dense<0.000000e+00> : vector<16x96xf32>
    %66 = tpu.matmul %24, %65, %cst_20 {dimension_numbers = #tpu.dot_dimension_numbers<[1], [0], [0], [1], [0, 0, 1, 1], [], []>} : vector<16x32xf32>, vector<32x96xf32>, vector<16x96xf32> -> vector<16x96xf32>
    %c168 = arith.constant 168 : index
    %c0_21 = arith.constant 0 : index
    %67 = vector.load %arg2[%c168, %c0_21] : memref<344x128xf32, #tpu.memory_space<vmem>>, vector<1x96xf32>
    %68 = vector.broadcast %67 : vector<1x96xf32> to vector<16x96xf32>
    %69 = arith.addf %66, %68 : vector<16x96xf32>
    %70 = vector.extract_strided_slice %69 {offsets = [0, 0], sizes = [16, 16], strides = [1, 1]} : vector<16x96xf32> to vector<16x16xf32>
    %71 = vector.extract_strided_slice %69 {offsets = [0, 32], sizes = [16, 16], strides = [1, 1]} : vector<16x96xf32> to vector<16x16xf32>
    %72 = vector.extract_strided_slice %69 {offsets = [0, 64], sizes = [16, 16], strides = [1, 1]} : vector<16x96xf32> to vector<16x16xf32>
    %cst_22 = arith.constant dense<0.000000e+00> : vector<16x16xf32>
    %73 = tpu.matmul %70, %71, %cst_22 {dimension_numbers = #tpu.dot_dimension_numbers<[1], [1], [0], [0], [0, 0, 1, 0], [], []>} : vector<16x16xf32>, vector<16x16xf32>, vector<16x16xf32> -> vector<16x16xf32>
    %cst_23 = arith.constant 2.500000e-01 : f32
    %74 = vector.broadcast %cst_23 : f32 to vector<16x16xf32>
    %75 = arith.mulf %73, %74 : vector<16x16xf32>
    %76 = arith.addf %75, %64 : vector<16x16xf32>
    %cst_24 = arith.constant dense<0xFF800000> : vector<16xf32>
    %77 = vector.multi_reduction <maximumf>, %76, %cst_24 [1] : vector<16x16xf32> to vector<16xf32>
    %78 = vector.shape_cast %77 : vector<16xf32> to vector<16x1xf32>
    %79 = vector.broadcast %78 : vector<16x1xf32> to vector<16x16xf32>
    %80 = arith.subf %76, %79 : vector<16x16xf32>
    %81 = math.exp %80 : vector<16x16xf32>
    %cst_25 = arith.constant dense<0.000000e+00> : vector<16xf32>
    %82 = vector.multi_reduction <add>, %81, %cst_25 [1] : vector<16x16xf32> to vector<16xf32>
    %83 = vector.shape_cast %82 : vector<16xf32> to vector<16x1xf32>
    %84 = vector.broadcast %83 : vector<16x1xf32> to vector<16x16xf32>
    %85 = arith.divf %81, %84 : vector<16x16xf32>
    %cst_26 = arith.constant dense<0.000000e+00> : vector<16x16xf32>
    %86 = tpu.matmul %85, %72, %cst_26 {dimension_numbers = #tpu.dot_dimension_numbers<[1], [0], [0], [1], [0, 0, 1, 1], [], []>} : vector<16x16xf32>, vector<16x16xf32>, vector<16x16xf32> -> vector<16x16xf32>
    %c40 = arith.constant 40 : index
    %c0_27 = arith.constant 0 : index
    %87 = vector.load %arg2[%c40, %c0_27] : memref<344x128xf32, #tpu.memory_space<vmem>>, vector<16x32xf32>
    %cst_28 = arith.constant dense<0.000000e+00> : vector<16x32xf32>
    %88 = tpu.matmul %86, %87, %cst_28 {dimension_numbers = #tpu.dot_dimension_numbers<[1], [0], [0], [1], [0, 0, 1, 1], [], []>} : vector<16x16xf32>, vector<16x32xf32>, vector<16x32xf32> -> vector<16x32xf32>
    %89 = vector.extract_strided_slice %69 {offsets = [0, 16], sizes = [16, 16], strides = [1, 1]} : vector<16x96xf32> to vector<16x16xf32>
    %90 = vector.extract_strided_slice %69 {offsets = [0, 48], sizes = [16, 16], strides = [1, 1]} : vector<16x96xf32> to vector<16x16xf32>
    %91 = vector.extract_strided_slice %69 {offsets = [0, 80], sizes = [16, 16], strides = [1, 1]} : vector<16x96xf32> to vector<16x16xf32>
    %cst_29 = arith.constant dense<0.000000e+00> : vector<16x16xf32>
    %92 = tpu.matmul %89, %90, %cst_29 {dimension_numbers = #tpu.dot_dimension_numbers<[1], [1], [0], [0], [0, 0, 1, 0], [], []>} : vector<16x16xf32>, vector<16x16xf32>, vector<16x16xf32> -> vector<16x16xf32>
    %cst_30 = arith.constant 2.500000e-01 : f32
    %93 = vector.broadcast %cst_30 : f32 to vector<16x16xf32>
    %94 = arith.mulf %92, %93 : vector<16x16xf32>
    %95 = arith.addf %94, %64 : vector<16x16xf32>
    %cst_31 = arith.constant dense<0xFF800000> : vector<16xf32>
    %96 = vector.multi_reduction <maximumf>, %95, %cst_31 [1] : vector<16x16xf32> to vector<16xf32>
    %97 = vector.shape_cast %96 : vector<16xf32> to vector<16x1xf32>
    %98 = vector.broadcast %97 : vector<16x1xf32> to vector<16x16xf32>
    %99 = arith.subf %95, %98 : vector<16x16xf32>
    %100 = math.exp %99 : vector<16x16xf32>
    %cst_32 = arith.constant dense<0.000000e+00> : vector<16xf32>
    %101 = vector.multi_reduction <add>, %100, %cst_32 [1] : vector<16x16xf32> to vector<16xf32>
    %102 = vector.shape_cast %101 : vector<16xf32> to vector<16x1xf32>
    %103 = vector.broadcast %102 : vector<16x1xf32> to vector<16x16xf32>
    %104 = arith.divf %100, %103 : vector<16x16xf32>
    %cst_33 = arith.constant dense<0.000000e+00> : vector<16x16xf32>
    %105 = tpu.matmul %104, %91, %cst_33 {dimension_numbers = #tpu.dot_dimension_numbers<[1], [0], [0], [1], [0, 0, 1, 1], [], []>} : vector<16x16xf32>, vector<16x16xf32>, vector<16x16xf32> -> vector<16x16xf32>
    %c56 = arith.constant 56 : index
    %c0_34 = arith.constant 0 : index
    %106 = vector.load %arg2[%c56, %c0_34] : memref<344x128xf32, #tpu.memory_space<vmem>>, vector<16x32xf32>
    %cst_35 = arith.constant dense<0.000000e+00> : vector<16x32xf32>
    %107 = tpu.matmul %105, %106, %cst_35 {dimension_numbers = #tpu.dot_dimension_numbers<[1], [0], [0], [1], [0, 0, 1, 1], [], []>} : vector<16x16xf32>, vector<16x32xf32>, vector<16x32xf32> -> vector<16x32xf32>
    %108 = arith.addf %88, %107 : vector<16x32xf32>
    %c169 = arith.constant 169 : index
    %c0_36 = arith.constant 0 : index
    %109 = vector.load %arg2[%c169, %c0_36] : memref<344x128xf32, #tpu.memory_space<vmem>>, vector<1x32xf32>
    %110 = vector.broadcast %109 : vector<1x32xf32> to vector<16x32xf32>
    %111 = arith.addf %108, %110 : vector<16x32xf32>
    %112 = arith.addf %24, %111 : vector<16x32xf32>
    %c170 = arith.constant 170 : index
    %c0_37 = arith.constant 0 : index
    %113 = vector.load %arg2[%c170, %c0_37] : memref<344x128xf32, #tpu.memory_space<vmem>>, vector<1x32xf32>
    %c171 = arith.constant 171 : index
    %c0_38 = arith.constant 0 : index
    %114 = vector.load %arg2[%c171, %c0_38] : memref<344x128xf32, #tpu.memory_space<vmem>>, vector<1x32xf32>
    %cst_39 = arith.constant dense<0.000000e+00> : vector<16xf32>
    %115 = vector.multi_reduction <add>, %112, %cst_39 [1] : vector<16x32xf32> to vector<16xf32>
    %116 = vector.shape_cast %115 : vector<16xf32> to vector<16x1xf32>
    %cst_40 = arith.constant 3.200000e+01 : f32
    %117 = vector.broadcast %cst_40 : f32 to vector<16x1xf32>
    %118 = arith.divf %116, %117 : vector<16x1xf32>
    %119 = vector.broadcast %118 : vector<16x1xf32> to vector<16x32xf32>
    %120 = arith.subf %112, %119 : vector<16x32xf32>
    %121 = arith.mulf %120, %120 : vector<16x32xf32>
    %cst_41 = arith.constant dense<0.000000e+00> : vector<16xf32>
    %122 = vector.multi_reduction <add>, %121, %cst_41 [1] : vector<16x32xf32> to vector<16xf32>
    %123 = vector.shape_cast %122 : vector<16xf32> to vector<16x1xf32>
    %cst_42 = arith.constant 3.200000e+01 : f32
    %124 = vector.broadcast %cst_42 : f32 to vector<16x1xf32>
    %125 = arith.divf %123, %124 : vector<16x1xf32>
    %126 = vector.broadcast %118 : vector<16x1xf32> to vector<16x32xf32>
    %127 = arith.subf %112, %126 : vector<16x32xf32>
    %cst_43 = arith.constant 9.99999996E-13 : f32
    %128 = vector.broadcast %cst_43 : f32 to vector<16x1xf32>
    %129 = arith.addf %125, %128 : vector<16x1xf32>
    %130 = math.rsqrt %129 : vector<16x1xf32>
    %131 = vector.broadcast %130 : vector<16x1xf32> to vector<16x32xf32>
    %132 = arith.mulf %127, %131 : vector<16x32xf32>
    %133 = vector.broadcast %113 : vector<1x32xf32> to vector<16x32xf32>
    %134 = arith.mulf %132, %133 : vector<16x32xf32>
    %135 = vector.broadcast %114 : vector<1x32xf32> to vector<16x32xf32>
    %136 = arith.addf %134, %135 : vector<16x32xf32>
    %c72 = arith.constant 72 : index
    %c0_44 = arith.constant 0 : index
    %137 = vector.load %arg2[%c72, %c0_44] : memref<344x128xf32, #tpu.memory_space<vmem>>, vector<32x64xf32>
    %cst_45 = arith.constant dense<0.000000e+00> : vector<16x64xf32>
    %138 = tpu.matmul %136, %137, %cst_45 {dimension_numbers = #tpu.dot_dimension_numbers<[1], [0], [0], [1], [0, 0, 1, 1], [], []>} : vector<16x32xf32>, vector<32x64xf32>, vector<16x64xf32> -> vector<16x64xf32>
    %c172 = arith.constant 172 : index
    %c0_46 = arith.constant 0 : index
    %139 = vector.load %arg2[%c172, %c0_46] : memref<344x128xf32, #tpu.memory_space<vmem>>, vector<1x64xf32>
    %140 = vector.broadcast %139 : vector<1x64xf32> to vector<16x64xf32>
    %141 = arith.addf %138, %140 : vector<16x64xf32>
    %142 = arith.mulf %141, %141 : vector<16x64xf32>
    %143 = arith.mulf %141, %142 : vector<16x64xf32>
    %cst_47 = arith.constant 4.471500e-02 : f32
    %144 = vector.broadcast %cst_47 : f32 to vector<16x64xf32>
    %145 = arith.mulf %144, %143 : vector<16x64xf32>
    %146 = arith.addf %141, %145 : vector<16x64xf32>
    %cst_48 = arith.constant 0.797884583 : f32
    %147 = vector.broadcast %cst_48 : f32 to vector<16x64xf32>
    %148 = arith.mulf %147, %146 : vector<16x64xf32>
    %149 = math.tanh %148 : vector<16x64xf32>
    %cst_49 = arith.constant 1.000000e+00 : f32
    %150 = vector.broadcast %cst_49 : f32 to vector<16x64xf32>
    %151 = arith.addf %150, %149 : vector<16x64xf32>
    %cst_50 = arith.constant 5.000000e-01 : f32
    %152 = vector.broadcast %cst_50 : f32 to vector<16x64xf32>
    %153 = arith.mulf %152, %151 : vector<16x64xf32>
    %154 = arith.mulf %141, %153 : vector<16x64xf32>
    %c104 = arith.constant 104 : index
    %c0_51 = arith.constant 0 : index
    %155 = vector.load %arg2[%c104, %c0_51] : memref<344x128xf32, #tpu.memory_space<vmem>>, vector<64x32xf32>
    %cst_52 = arith.constant dense<0.000000e+00> : vector<16x32xf32>
    %156 = tpu.matmul %154, %155, %cst_52 {dimension_numbers = #tpu.dot_dimension_numbers<[1], [0], [0], [1], [0, 0, 1, 1], [], []>} : vector<16x64xf32>, vector<64x32xf32>, vector<16x32xf32> -> vector<16x32xf32>
    %c173 = arith.constant 173 : index
    %c0_53 = arith.constant 0 : index
    %157 = vector.load %arg2[%c173, %c0_53] : memref<344x128xf32, #tpu.memory_space<vmem>>, vector<1x32xf32>
    %158 = vector.broadcast %157 : vector<1x32xf32> to vector<16x32xf32>
    %159 = arith.addf %156, %158 : vector<16x32xf32>
    %160 = arith.addf %136, %159 : vector<16x32xf32>
    %c174 = arith.constant 174 : index
    %c0_54 = arith.constant 0 : index
    %161 = vector.load %arg2[%c174, %c0_54] : memref<344x128xf32, #tpu.memory_space<vmem>>, vector<1x32xf32>
    %c175 = arith.constant 175 : index
    %c0_55 = arith.constant 0 : index
    %162 = vector.load %arg2[%c175, %c0_55] : memref<344x128xf32, #tpu.memory_space<vmem>>, vector<1x32xf32>
    %cst_56 = arith.constant dense<0.000000e+00> : vector<16xf32>
    %163 = vector.multi_reduction <add>, %160, %cst_56 [1] : vector<16x32xf32> to vector<16xf32>
    %164 = vector.shape_cast %163 : vector<16xf32> to vector<16x1xf32>
    %cst_57 = arith.constant 3.200000e+01 : f32
    %165 = vector.broadcast %cst_57 : f32 to vector<16x1xf32>
    %166 = arith.divf %164, %165 : vector<16x1xf32>
    %167 = vector.broadcast %166 : vector<16x1xf32> to vector<16x32xf32>
    %168 = arith.subf %160, %167 : vector<16x32xf32>
    %169 = arith.mulf %168, %168 : vector<16x32xf32>
    %cst_58 = arith.constant dense<0.000000e+00> : vector<16xf32>
    %170 = vector.multi_reduction <add>, %169, %cst_58 [1] : vector<16x32xf32> to vector<16xf32>
    %171 = vector.shape_cast %170 : vector<16xf32> to vector<16x1xf32>
    %cst_59 = arith.constant 3.200000e+01 : f32
    %172 = vector.broadcast %cst_59 : f32 to vector<16x1xf32>
    %173 = arith.divf %171, %172 : vector<16x1xf32>
    %174 = vector.broadcast %166 : vector<16x1xf32> to vector<16x32xf32>
    %175 = arith.subf %160, %174 : vector<16x32xf32>
    %cst_60 = arith.constant 9.99999996E-13 : f32
    %176 = vector.broadcast %cst_60 : f32 to vector<16x1xf32>
    %177 = arith.addf %173, %176 : vector<16x1xf32>
    %178 = math.rsqrt %177 : vector<16x1xf32>
    %179 = vector.broadcast %178 : vector<16x1xf32> to vector<16x32xf32>
    %180 = arith.mulf %175, %179 : vector<16x32xf32>
    %181 = vector.broadcast %161 : vector<1x32xf32> to vector<16x32xf32>
    %182 = arith.mulf %180, %181 : vector<16x32xf32>
    %183 = vector.broadcast %162 : vector<1x32xf32> to vector<16x32xf32>
    %184 = arith.addf %182, %183 : vector<16x32xf32>
    %c176 = arith.constant 176 : index
    %c0_61 = arith.constant 0 : index
    %185 = vector.load %arg2[%c176, %c0_61] : memref<344x128xf32, #tpu.memory_space<vmem>>, vector<32x96xf32>
    %cst_62 = arith.constant dense<0.000000e+00> : vector<16x96xf32>
    %186 = tpu.matmul %184, %185, %cst_62 {dimension_numbers = #tpu.dot_dimension_numbers<[1], [0], [0], [1], [0, 0, 1, 1], [], []>} : vector<16x32xf32>, vector<32x96xf32>, vector<16x96xf32> -> vector<16x96xf32>
    %c336 = arith.constant 336 : index
    %c0_63 = arith.constant 0 : index
    %187 = vector.load %arg2[%c336, %c0_63] : memref<344x128xf32, #tpu.memory_space<vmem>>, vector<1x96xf32>
    %188 = vector.broadcast %187 : vector<1x96xf32> to vector<16x96xf32>
    %189 = arith.addf %186, %188 : vector<16x96xf32>
    %190 = vector.extract_strided_slice %189 {offsets = [0, 0], sizes = [16, 16], strides = [1, 1]} : vector<16x96xf32> to vector<16x16xf32>
    %191 = vector.extract_strided_slice %189 {offsets = [0, 32], sizes = [16, 16], strides = [1, 1]} : vector<16x96xf32> to vector<16x16xf32>
    %192 = vector.extract_strided_slice %189 {offsets = [0, 64], sizes = [16, 16], strides = [1, 1]} : vector<16x96xf32> to vector<16x16xf32>
    %cst_64 = arith.constant dense<0.000000e+00> : vector<16x16xf32>
    %193 = tpu.matmul %190, %191, %cst_64 {dimension_numbers = #tpu.dot_dimension_numbers<[1], [1], [0], [0], [0, 0, 1, 0], [], []>} : vector<16x16xf32>, vector<16x16xf32>, vector<16x16xf32> -> vector<16x16xf32>
    %cst_65 = arith.constant 2.500000e-01 : f32
    %194 = vector.broadcast %cst_65 : f32 to vector<16x16xf32>
    %195 = arith.mulf %193, %194 : vector<16x16xf32>
    %196 = arith.addf %195, %64 : vector<16x16xf32>
    %cst_66 = arith.constant dense<0xFF800000> : vector<16xf32>
    %197 = vector.multi_reduction <maximumf>, %196, %cst_66 [1] : vector<16x16xf32> to vector<16xf32>
    %198 = vector.shape_cast %197 : vector<16xf32> to vector<16x1xf32>
    %199 = vector.broadcast %198 : vector<16x1xf32> to vector<16x16xf32>
    %200 = arith.subf %196, %199 : vector<16x16xf32>
    %201 = math.exp %200 : vector<16x16xf32>
    %cst_67 = arith.constant dense<0.000000e+00> : vector<16xf32>
    %202 = vector.multi_reduction <add>, %201, %cst_67 [1] : vector<16x16xf32> to vector<16xf32>
    %203 = vector.shape_cast %202 : vector<16xf32> to vector<16x1xf32>
    %204 = vector.broadcast %203 : vector<16x1xf32> to vector<16x16xf32>
    %205 = arith.divf %201, %204 : vector<16x16xf32>
    %cst_68 = arith.constant dense<0.000000e+00> : vector<16x16xf32>
    %206 = tpu.matmul %205, %192, %cst_68 {dimension_numbers = #tpu.dot_dimension_numbers<[1], [0], [0], [1], [0, 0, 1, 1], [], []>} : vector<16x16xf32>, vector<16x16xf32>, vector<16x16xf32> -> vector<16x16xf32>
    %c208 = arith.constant 208 : index
    %c0_69 = arith.constant 0 : index
    %207 = vector.load %arg2[%c208, %c0_69] : memref<344x128xf32, #tpu.memory_space<vmem>>, vector<16x32xf32>
    %cst_70 = arith.constant dense<0.000000e+00> : vector<16x32xf32>
    %208 = tpu.matmul %206, %207, %cst_70 {dimension_numbers = #tpu.dot_dimension_numbers<[1], [0], [0], [1], [0, 0, 1, 1], [], []>} : vector<16x16xf32>, vector<16x32xf32>, vector<16x32xf32> -> vector<16x32xf32>
    %209 = vector.extract_strided_slice %189 {offsets = [0, 16], sizes = [16, 16], strides = [1, 1]} : vector<16x96xf32> to vector<16x16xf32>
    %210 = vector.extract_strided_slice %189 {offsets = [0, 48], sizes = [16, 16], strides = [1, 1]} : vector<16x96xf32> to vector<16x16xf32>
    %211 = vector.extract_strided_slice %189 {offsets = [0, 80], sizes = [16, 16], strides = [1, 1]} : vector<16x96xf32> to vector<16x16xf32>
    %cst_71 = arith.constant dense<0.000000e+00> : vector<16x16xf32>
    %212 = tpu.matmul %209, %210, %cst_71 {dimension_numbers = #tpu.dot_dimension_numbers<[1], [1], [0], [0], [0, 0, 1, 0], [], []>} : vector<16x16xf32>, vector<16x16xf32>, vector<16x16xf32> -> vector<16x16xf32>
    %cst_72 = arith.constant 2.500000e-01 : f32
    %213 = vector.broadcast %cst_72 : f32 to vector<16x16xf32>
    %214 = arith.mulf %212, %213 : vector<16x16xf32>
    %215 = arith.addf %214, %64 : vector<16x16xf32>
    %cst_73 = arith.constant dense<0xFF800000> : vector<16xf32>
    %216 = vector.multi_reduction <maximumf>, %215, %cst_73 [1] : vector<16x16xf32> to vector<16xf32>
    %217 = vector.shape_cast %216 : vector<16xf32> to vector<16x1xf32>
    %218 = vector.broadcast %217 : vector<16x1xf32> to vector<16x16xf32>
    %219 = arith.subf %215, %218 : vector<16x16xf32>
    %220 = math.exp %219 : vector<16x16xf32>
    %cst_74 = arith.constant dense<0.000000e+00> : vector<16xf32>
    %221 = vector.multi_reduction <add>, %220, %cst_74 [1] : vector<16x16xf32> to vector<16xf32>
    %222 = vector.shape_cast %221 : vector<16xf32> to vector<16x1xf32>
    %223 = vector.broadcast %222 : vector<16x1xf32> to vector<16x16xf32>
    %224 = arith.divf %220, %223 : vector<16x16xf32>
    %cst_75 = arith.constant dense<0.000000e+00> : vector<16x16xf32>
    %225 = tpu.matmul %224, %211, %cst_75 {dimension_numbers = #tpu.dot_dimension_numbers<[1], [0], [0], [1], [0, 0, 1, 1], [], []>} : vector<16x16xf32>, vector<16x16xf32>, vector<16x16xf32> -> vector<16x16xf32>
    %c224 = arith.constant 224 : index
    %c0_76 = arith.constant 0 : index
    %226 = vector.load %arg2[%c224, %c0_76] : memref<344x128xf32, #tpu.memory_space<vmem>>, vector<16x32xf32>
    %cst_77 = arith.constant dense<0.000000e+00> : vector<16x32xf32>
    %227 = tpu.matmul %225, %226, %cst_77 {dimension_numbers = #tpu.dot_dimension_numbers<[1], [0], [0], [1], [0, 0, 1, 1], [], []>} : vector<16x16xf32>, vector<16x32xf32>, vector<16x32xf32> -> vector<16x32xf32>
    %228 = arith.addf %208, %227 : vector<16x32xf32>
    %c337 = arith.constant 337 : index
    %c0_78 = arith.constant 0 : index
    %229 = vector.load %arg2[%c337, %c0_78] : memref<344x128xf32, #tpu.memory_space<vmem>>, vector<1x32xf32>
    %230 = vector.broadcast %229 : vector<1x32xf32> to vector<16x32xf32>
    %231 = arith.addf %228, %230 : vector<16x32xf32>
    %232 = arith.addf %184, %231 : vector<16x32xf32>
    %c338 = arith.constant 338 : index
    %c0_79 = arith.constant 0 : index
    %233 = vector.load %arg2[%c338, %c0_79] : memref<344x128xf32, #tpu.memory_space<vmem>>, vector<1x32xf32>
    %c339 = arith.constant 339 : index
    %c0_80 = arith.constant 0 : index
    %234 = vector.load %arg2[%c339, %c0_80] : memref<344x128xf32, #tpu.memory_space<vmem>>, vector<1x32xf32>
    %cst_81 = arith.constant dense<0.000000e+00> : vector<16xf32>
    %235 = vector.multi_reduction <add>, %232, %cst_81 [1] : vector<16x32xf32> to vector<16xf32>
    %236 = vector.shape_cast %235 : vector<16xf32> to vector<16x1xf32>
    %cst_82 = arith.constant 3.200000e+01 : f32
    %237 = vector.broadcast %cst_82 : f32 to vector<16x1xf32>
    %238 = arith.divf %236, %237 : vector<16x1xf32>
    %239 = vector.broadcast %238 : vector<16x1xf32> to vector<16x32xf32>
    %240 = arith.subf %232, %239 : vector<16x32xf32>
    %241 = arith.mulf %240, %240 : vector<16x32xf32>
    %cst_83 = arith.constant dense<0.000000e+00> : vector<16xf32>
    %242 = vector.multi_reduction <add>, %241, %cst_83 [1] : vector<16x32xf32> to vector<16xf32>
    %243 = vector.shape_cast %242 : vector<16xf32> to vector<16x1xf32>
    %cst_84 = arith.constant 3.200000e+01 : f32
    %244 = vector.broadcast %cst_84 : f32 to vector<16x1xf32>
    %245 = arith.divf %243, %244 : vector<16x1xf32>
    %246 = vector.broadcast %238 : vector<16x1xf32> to vector<16x32xf32>
    %247 = arith.subf %232, %246 : vector<16x32xf32>
    %cst_85 = arith.constant 9.99999996E-13 : f32
    %248 = vector.broadcast %cst_85 : f32 to vector<16x1xf32>
    %249 = arith.addf %245, %248 : vector<16x1xf32>
    %250 = math.rsqrt %249 : vector<16x1xf32>
    %251 = vector.broadcast %250 : vector<16x1xf32> to vector<16x32xf32>
    %252 = arith.mulf %247, %251 : vector<16x32xf32>
    %253 = vector.broadcast %233 : vector<1x32xf32> to vector<16x32xf32>
    %254 = arith.mulf %252, %253 : vector<16x32xf32>
    %255 = vector.broadcast %234 : vector<1x32xf32> to vector<16x32xf32>
    %256 = arith.addf %254, %255 : vector<16x32xf32>
    %c240 = arith.constant 240 : index
    %c0_86 = arith.constant 0 : index
    %257 = vector.load %arg2[%c240, %c0_86] : memref<344x128xf32, #tpu.memory_space<vmem>>, vector<32x64xf32>
    %cst_87 = arith.constant dense<0.000000e+00> : vector<16x64xf32>
    %258 = tpu.matmul %256, %257, %cst_87 {dimension_numbers = #tpu.dot_dimension_numbers<[1], [0], [0], [1], [0, 0, 1, 1], [], []>} : vector<16x32xf32>, vector<32x64xf32>, vector<16x64xf32> -> vector<16x64xf32>
    %c340 = arith.constant 340 : index
    %c0_88 = arith.constant 0 : index
    %259 = vector.load %arg2[%c340, %c0_88] : memref<344x128xf32, #tpu.memory_space<vmem>>, vector<1x64xf32>
    %260 = vector.broadcast %259 : vector<1x64xf32> to vector<16x64xf32>
    %261 = arith.addf %258, %260 : vector<16x64xf32>
    %262 = arith.mulf %261, %261 : vector<16x64xf32>
    %263 = arith.mulf %261, %262 : vector<16x64xf32>
    %cst_89 = arith.constant 4.471500e-02 : f32
    %264 = vector.broadcast %cst_89 : f32 to vector<16x64xf32>
    %265 = arith.mulf %264, %263 : vector<16x64xf32>
    %266 = arith.addf %261, %265 : vector<16x64xf32>
    %cst_90 = arith.constant 0.797884583 : f32
    %267 = vector.broadcast %cst_90 : f32 to vector<16x64xf32>
    %268 = arith.mulf %267, %266 : vector<16x64xf32>
    %269 = math.tanh %268 : vector<16x64xf32>
    %cst_91 = arith.constant 1.000000e+00 : f32
    %270 = vector.broadcast %cst_91 : f32 to vector<16x64xf32>
    %271 = arith.addf %270, %269 : vector<16x64xf32>
    %cst_92 = arith.constant 5.000000e-01 : f32
    %272 = vector.broadcast %cst_92 : f32 to vector<16x64xf32>
    %273 = arith.mulf %272, %271 : vector<16x64xf32>
    %274 = arith.mulf %261, %273 : vector<16x64xf32>
    %c272 = arith.constant 272 : index
    %c0_93 = arith.constant 0 : index
    %275 = vector.load %arg2[%c272, %c0_93] : memref<344x128xf32, #tpu.memory_space<vmem>>, vector<64x32xf32>
    %cst_94 = arith.constant dense<0.000000e+00> : vector<16x32xf32>
    %276 = tpu.matmul %274, %275, %cst_94 {dimension_numbers = #tpu.dot_dimension_numbers<[1], [0], [0], [1], [0, 0, 1, 1], [], []>} : vector<16x64xf32>, vector<64x32xf32>, vector<16x32xf32> -> vector<16x32xf32>
    %c341 = arith.constant 341 : index
    %c0_95 = arith.constant 0 : index
    %277 = vector.load %arg2[%c341, %c0_95] : memref<344x128xf32, #tpu.memory_space<vmem>>, vector<1x32xf32>
    %278 = vector.broadcast %277 : vector<1x32xf32> to vector<16x32xf32>
    %279 = arith.addf %276, %278 : vector<16x32xf32>
    %280 = arith.addf %256, %279 : vector<16x32xf32>
    %c342 = arith.constant 342 : index
    %c0_96 = arith.constant 0 : index
    %281 = vector.load %arg2[%c342, %c0_96] : memref<344x128xf32, #tpu.memory_space<vmem>>, vector<1x32xf32>
    %c343 = arith.constant 343 : index
    %c0_97 = arith.constant 0 : index
    %282 = vector.load %arg2[%c343, %c0_97] : memref<344x128xf32, #tpu.memory_space<vmem>>, vector<1x32xf32>
    %cst_98 = arith.constant dense<0.000000e+00> : vector<16xf32>
    %283 = vector.multi_reduction <add>, %280, %cst_98 [1] : vector<16x32xf32> to vector<16xf32>
    %284 = vector.shape_cast %283 : vector<16xf32> to vector<16x1xf32>
    %cst_99 = arith.constant 3.200000e+01 : f32
    %285 = vector.broadcast %cst_99 : f32 to vector<16x1xf32>
    %286 = arith.divf %284, %285 : vector<16x1xf32>
    %287 = vector.broadcast %286 : vector<16x1xf32> to vector<16x32xf32>
    %288 = arith.subf %280, %287 : vector<16x32xf32>
    %289 = arith.mulf %288, %288 : vector<16x32xf32>
    %cst_100 = arith.constant dense<0.000000e+00> : vector<16xf32>
    %290 = vector.multi_reduction <add>, %289, %cst_100 [1] : vector<16x32xf32> to vector<16xf32>
    %291 = vector.shape_cast %290 : vector<16xf32> to vector<16x1xf32>
    %cst_101 = arith.constant 3.200000e+01 : f32
    %292 = vector.broadcast %cst_101 : f32 to vector<16x1xf32>
    %293 = arith.divf %291, %292 : vector<16x1xf32>
    %294 = vector.broadcast %286 : vector<16x1xf32> to vector<16x32xf32>
    %295 = arith.subf %280, %294 : vector<16x32xf32>
    %cst_102 = arith.constant 9.99999996E-13 : f32
    %296 = vector.broadcast %cst_102 : f32 to vector<16x1xf32>
    %297 = arith.addf %293, %296 : vector<16x1xf32>
    %298 = math.rsqrt %297 : vector<16x1xf32>
    %299 = vector.broadcast %298 : vector<16x1xf32> to vector<16x32xf32>
    %300 = arith.mulf %295, %299 : vector<16x32xf32>
    %301 = vector.broadcast %281 : vector<1x32xf32> to vector<16x32xf32>
    %302 = arith.mulf %300, %301 : vector<16x32xf32>
    %303 = vector.broadcast %282 : vector<1x32xf32> to vector<16x32xf32>
    %304 = arith.addf %302, %303 : vector<16x32xf32>
    %305 = tpu.iota {dimensions = array<i32: 0>} : vector<2x16xi32>
    %306 = tpu.iota {dimensions = array<i32: 1>} : vector<2x16xi32>
    %c8_i32_103 = arith.constant 8 : i32
    %307 = vector.broadcast %c8_i32_103 : i32 to vector<2x16xi32>
    %308 = arith.muli %305, %307 : vector<2x16xi32>
    %309 = arith.cmpi eq, %306, %308 : vector<2x16xi32>
    %310 = arith.extui %309 : vector<2x16xi1> to vector<2x16xi32>
    %311 = arith.sitofp %310 : vector<2x16xi32> to vector<2x16xf32>
    %cst_104 = arith.constant dense<0.000000e+00> : vector<2x32xf32>
    %312 = tpu.matmul %311, %304, %cst_104 {dimension_numbers = #tpu.dot_dimension_numbers<[1], [0], [0], [1], [0, 0, 1, 1], [], []>} : vector<2x16xf32>, vector<16x32xf32>, vector<2x32xf32> -> vector<2x32xf32>
    %c0_105 = arith.constant 0 : index
    %c0_106 = arith.constant 0 : index
    %313 = vector.load %arg3[%c0_105, %c0_106] : memref<2x32xf32, #tpu.memory_space<vmem>>, vector<2x32xf32>
    tpu.vector_store %arg3[%c0_105, %c0_106], %312 {strides = array<i32>} : memref<2x32xf32, #tpu.memory_space<vmem>>, vector<2x32xf32>,
    return
  }
}

</mosaic_0001>

<llo_original>
// kernel: tpu_custom_call.1
$region0: #{tpu_custom_call.1}
  #allocation0 [shape = 'u32[]', space=smem, size = 0x4, offset = 0x4, fixed_abs, tag = 'smem constant byte address 0x4 - core index']
  #allocation1 [shape = 'u32[144,128]{1,0:T(1,128)}', space=vmem, size = 0x12000, scoped, tag = 'internal scratch']
  %s0 = inlined_call_operand.hbm [shape: f32[16,32], index: 0, kind: input, shape index: {}]
  %s1 = inlined_call_operand.vmem [shape: f32[1,16], index: 1, kind: input, shape index: {}]
  %s2 = inlined_call_operand.hbm [shape: f32[344,128], index: 2, kind: input, shape index: {}]
  %s3 = inlined_call_operand.hbm [shape: f32[2,32], index: 3, kind: output, shape index: {}]
  %s4 = sld [smem:[#allocation0]]
  $region30: #{tpu_custom_call.1} parent=0
    _
  %s6 = ssub.s32 1, %s4
  %s7 = scalar_select 0, %s6, %s4
  $region1: #{tpu_custom_call.1} parent=0
    #allocation2 [shape = 'u8[8192]{0}', space=vmem, size = 0x2000, scoped, tag = 'input window, operand 0, single buffered']
    #allocation3 [shape = 's32[1]{0}', space=sflag, size = 0x4, scoped, tag = 'scoped memory for tpu_custom_call.1']
    #allocation4 [shape = 's32[1]{0}', space=sflag, size = 0x4, scoped, tag = 'scoped memory for tpu_custom_call.1']
    #allocation5 [shape = 'u8[176128]{0}', space=vmem, size = 0x2b000, scoped, tag = 'input window, operand 2, single buffered']
    #allocation6 [shape = 's32[1]{0}', space=sflag, size = 0x4, scoped, tag = 'scoped memory for tpu_custom_call.1']
    #allocation7 [shape = 'u8[1024]{0}', space=vmem, size = 0x400, scoped, tag = 'output window, operand 0, single buffered']
    %8 = vsyncpa [#allocation3], 0
    %9 = vsyncpa [#allocation6], 0
    %10 = vsyncpa [#allocation4], 0
    // Predicated region
    $region2: #{tpu_custom_call.1} parent=1 // pred_check
      _
    $region3: #{tpu_custom_call.1} parent=1 // pred_check_branch
      %12 = sbr.rel (0) target = $region5
    $region4: #{tpu_custom_call.1} parent=1 // pred_region
      %s14 = ssub.s32 256, 256
      %15 = vsyncadd [#allocation3], %s14
      %s16 = sshll.u32 [#allocation2], 4
      %s17 = int_to_ptr.vmem [resolvable:$true] %s16
      %22 = dma.hbm_to_vmem [thread:$0]  %s0, 256, %s17, [#allocation3], 128, 128, 8
    $region5: #{tpu_custom_call.1} parent=1 // pred_fallthru
      _
    // Predicated region
    $region6: #{tpu_custom_call.1} parent=1 // pred_check
      _
    $region7: #{tpu_custom_call.1} parent=1 // pred_check_branch
      %24 = sbr.rel (0) target = $region9
    $region8: #{tpu_custom_call.1} parent=1 // pred_region
      _
    $region9: #{tpu_custom_call.1} parent=1 // pred_fallthru
      _
    // Predicated region
    $region10: #{tpu_custom_call.1} parent=1 // pred_check
      _
    $region11: #{tpu_custom_call.1} parent=1 // pred_check_branch
      %26 = sbr.rel (0) target = $region13
    $region12: #{tpu_custom_call.1} parent=1 // pred_region
      %s28 = ssub.s32 5504, 5504
      %29 = vsyncadd [#allocation6], %s28
      %s30 = sshll.u32 [#allocation5], 4
      %s31 = int_to_ptr.vmem [resolvable:$true] %s30
      %36 = dma.hbm_to_vmem [thread:$0]  %s2, 5504, %s31, [#allocation6], 128, 128, 8
    $region13: #{tpu_custom_call.1} parent=1 // pred_fallthru
      _
    // Predicated region
    $region14: #{tpu_custom_call.1} parent=1 // pred_check
      _
    $region15: #{tpu_custom_call.1} parent=1 // pred_check_branch
      %38 = sbr.rel (0) target = $region17
    $region16: #{tpu_custom_call.1} parent=1 // pred_region
      %39 = dma.done [#allocation3], 256
    $region17: #{tpu_custom_call.1} parent=1 // pred_fallthru
      _
    // Predicated region
    $region18: #{tpu_custom_call.1} parent=1 // pred_check
      _
    $region19: #{tpu_custom_call.1} parent=1 // pred_check_branch
      %41 = sbr.rel (0) target = $region21
    $region20: #{tpu_custom_call.1} parent=1 // pred_region
      %42 = dma.done [#allocation6], 5504
    $region21: #{tpu_custom_call.1} parent=1 // pred_fallthru
      _
    %v43 = vld [vmem:[#allocation2] sm:$0xff]
    %v44 = vld [vmem:[#allocation2 + $0x8] sm:$0xff]
    %v45 = vld [vmem:[#allocation5] sm:$0x1]
    %v46 = vld [vmem:[#allocation5 + $0x1] sm:$0x1]
    %vm47 = vcmask 261120
    %v48 = vsel %vm47, %v43, 0.0
    %49 = vadd.xlane.f32.xlu0 %v48
    %v50 = vpop.xlane.xlu0 %49
    %v51 = vsel %vm47, %v44, 0.0
    %52 = vadd.xlane.f32.xlu0 %v51
    %v53 = vpop.xlane.xlu0 %52
    %v54 = vrcp.pop 32.0
    %v55 = vmul.f32 %v50, %v54
    %v56 = vmul.f32 %v53, %v54
    %v57 = vsub.f32 %v43, %v55
    %v58 = vsub.f32 %v44, %v56
    %v59 = vmul.f32 %v57, %v57
    %v60 = vmul.f32 %v58, %v58
    %v61 = vsel %vm47, %v59, 0.0
    %62 = vadd.xlane.f32.xlu0 %v61
    %v63 = vpop.xlane.xlu0 %62
    %v64 = vsel %vm47, %v60, 0.0
    %65 = vadd.xlane.f32.xlu0 %v64
    %v66 = vpop.xlane.xlu0 %65
    %v67 = vmul.f32 %v63, %v54
    %v68 = vmul.f32 %v66, %v54
    %v69 = vadd.f32 %v67, 1e-12
    %v70 = vadd.f32 %v68, 1e-12
    %v71 = vrsqrt.pop %v69
    %v72 = vrsqrt.pop %v70
    %v73 = vmul.f32 %v57, %v71
    %v74 = vmul.f32 %v58, %v72
    %v75 = vlaneseq
    %v76 = vshrl.u32 %v75, 7
    %v77 = vsub.s32 0, %v76
    %v78 = vrot.slane %v45, %v77
    %v79 = vmul.f32 %v73, %v78
    %v80 = vmul.f32 %v74, %v78
    %v81 = vlaneseq
    %v82 = vshrl.u32 %v81, 7
    %v83 = vsub.s32 0, %v82
    %v84 = vrot.slane %v46, %v83
    %v85 = vadd.f32 %v79, %v84
    %v86 = vadd.f32 %v80, %v84
    %v87 = vld [vmem:[%s1] sm:$0x1]
    %v88 = vsub.f32 1.0, %v87
    %v89 = vmul.f32 %v88, -10000.0
    %v90 = vlaneseq
    %v91 = vshrl.u32 %v90, 7
    %v92 = vadd.s32 %v91, 8
    %v93 = vlaneseq
    %v94 = vand.u32 %v93, 127
    %vm95 = vcmp.ge.s32.totalorder %v91, 0
    %vm96 = vcmp.ge.s32.totalorder %v92, 0
    %vm97 = vcmp.lt.s32.totalorder %v91, 8
    %vm98 = vcmp.lt.s32.totalorder %v92, 8
    %vm99 = vmand %vm95, %vm97
    %vm100 = vmand %vm96, %vm98
    %vm101 = vcmp.ge.s32.totalorder %v94, 0
    %vm102 = vcmp.lt.s32.totalorder %v94, 8
    %vm103 = vmand %vm101, %vm102
    %vm104 = vmand %vm99, %vm103
    %vm105 = vmand %vm100, %vm103
    %v106 = vsel %vm104, 1, 0
    %v107 = vsel %vm105, 1, 0
    %v108 = vcvt.s32.f32 %v106
    %v109 = vcvt.s32.f32 %v107
    %vm110 = vcmp.ge.s32.totalorder %v91, 8
    %vm111 = vcmp.ge.s32.totalorder %v92, 8
    %vm112 = vcmp.lt.s32.totalorder %v91, 16
    %vm113 = vcmp.lt.s32.totalorder %v92, 16
    %vm114 = vmand %vm110, %vm112
    %vm115 = vmand %vm111, %vm113
    %vm116 = vcmp.ge.s32.totalorder %v94, 8
    %vm117 = vcmp.lt.s32.totalorder %v94, 16
    %vm118 = vmand %vm116, %vm117
    %vm119 = vmand %vm114, %vm118
    %vm120 = vmand %vm115, %vm118
    %v121 = vsel %vm119, 1, 0
    %v122 = vsel %vm120, 1, 0
    %v123 = vcvt.s32.f32 %v121
    %v124 = vcvt.s32.f32 %v122
    %v125 = vadd.f32 %v108, %v123
    %v126 = vadd.f32 %v109, %v124
    %v127 = vsub.f32 1.0, %v125
    %v128 = vsub.f32 1.0, %v126
    %v129 = vmul.f32 %v127, -10000.0
    %v130 = vmul.f32 %v128, -10000.0
    %v132 = vlaneseq
    %v133 = vshrl.u32 %v132, 7
    %v134 = vsub.s32 0, %v133
    %v135 = vrot.slane %v89, %v134
    %v137 = vadd.f32 %v135, %v129
    %v138 = vadd.f32 %v135, %v130
    %v139 = vld [vmem:[#allocation5 + $0x8] sm:$0xff]
    %v140 = vld [vmem:[#allocation5 + $0x10] sm:$0xff]
    %v141 = vld [vmem:[#allocation5 + $0x18] sm:$0xff]
    %v142 = vld [vmem:[#allocation5 + $0x20] sm:$0xff]
    %v143 = vld [vmem:[#allocation5 + $0xa8] sm:$0x1]
    %v144 = vlaneseq
    %v145 = vshrl.u32 %v144, 7
    %v146 = vsub.s32 0, %v145
    %v147 = vrot.slane %v143, %v146
    %v149 = vsel %vm47, %v85, 0
    %v152 = vsel %vm47, %v86, 0
    %154 = vmatprep.subr.mxu0 0.0
    %155 = vmatpush1.msra.mxu0 %v139
    %156 = vmatprep.subr.mxu0 0.0
    %157 = vmatpush1.msra.mxu0 %v140
    %158 = vmatprep.subr.mxu0 0.0
    %159 = vmatpush1.msra.mxu0 %v141
    %160 = vmatprep.subr.mxu0 0.0
    %161 = vmatpush1.msra.mxu0 %v142
    %162 = vmatprep.subr.mxu0 0.0
    %163 = vmatpush1.msra.mxu0 0.0
    %164 = vmatprep.subr.mxu0 0.0
    %165 = vmatpush1.msra.mxu0 0.0
    %166 = vmatprep.subr.mxu0 0.0
    %167 = vmatpush1.msra.mxu0 0.0
    %168 = vmatprep.subr.mxu0 0.0
    %169 = vmatpush1.msra.mxu0 0.0
    %170 = vmatprep.subr.mxu0 0.0
    %171 = vmatpush1.msra.mxu0 0.0
    %172 = vmatprep.subr.mxu0 0.0
    %173 = vmatpush1.msra.mxu0 0.0
    %174 = vmatprep.subr.mxu0 0.0
    %175 = vmatpush1.msra.mxu0 0.0
    %176 = vmatprep.subr.mxu0 0.0
    %177 = vmatpush1.msra.mxu0 0.0
    %178 = vmatprep.subr.mxu0 0.0
    %179 = vmatpush1.msra.mxu0 0.0
    %180 = vmatprep.subr.mxu0 0.0
    %181 = vmatpush1.msra.mxu0 0.0
    %182 = vmatprep.subr.mxu0 0.0
    %183 = vmatpush1.msra.mxu0 0.0
    %184 = vmatprep.subr.mxu0 0.0
    %185 = vmatpush1.msra.mxu0 0.0
    %186 = vmatprep.subr.mxu0 0.0
    %187 = vmatpush1.msra.mxu0 0.0
    %188 = vmatprep.subr.mxu0 0.0
    %189 = vmatpush1.msra.mxu0 0.0
    %190 = vmatprep.subr.mxu0 0.0
    %191 = vmatpush1.msra.mxu0 0.0
    %192 = vmatprep.subr.mxu0 0.0
    %193 = vmatpush1.msra.mxu0 0.0
    %194 = vmatprep.subr.mxu0 0.0
    %195 = vmatpush1.msra.mxu0 0.0
    %196 = vmatprep.subr.mxu0 0.0
    %197 = vmatpush1.msra.mxu0 0.0
    %198 = vmatprep.subr.mxu0 0.0
    %199 = vmatpush1.msra.mxu0 0.0
    %200 = vmatprep.subr.mxu0 0.0
    %201 = vmatpush1.msra.mxu0 0.0
    %202 = vmatprep.subr.mxu0 0.0
    %203 = vmatpush1.msra.mxu0 0.0
    %204 = vmatprep.subr.mxu0 0.0
    %205 = vmatpush1.msra.mxu0 0.0
    %206 = vmatprep.subr.mxu0 0.0
    %207 = vmatpush1.msra.mxu0 0.0
    %208 = vmatprep.subr.mxu0 0.0
    %209 = vmatpush1.msra.mxu0 0.0
    %210 = vmatprep.subr.mxu0 0.0
    %211 = vmatpush1.msra.mxu0 0.0
    %212 = vmatprep.subr.mxu0 0.0
    %213 = vmatpush1.msra.mxu0 0.0
    %214 = vmatprep.subr.mxu0 0.0
    %215 = vmatpush1.msra.mxu0 0.0
    %216 = vmatprep.subr.mxu0 0.0
    %217 = vmatpush1.msra.mxu0 0.0
    %218 = vmatprep.mubr.f32.mxu0 0.0
    %219 = vmatmul.mubr.f32.gmra.mrb[0].mxu0 %v149
    %v220 = vpop.f32.mrb[0].mxu0
    %v221 = vadd.f32 %v147, %v220
    %v222 = vpop.f32.mrb[0].mxu0
    %223 = vmatprep.mubr.f32.mxu0 0.0
    %224 = vmatmul.mubr.f32.gmra.mrb[0].mxu0 %v152
    %v225 = vpop.f32.mrb[0].mxu0
    %v226 = vadd.f32 %v147, %v225
    %v227 = vpop.f32.mrb[0].mxu0
    %228 = vdwg.mxu0
    %231 = vrot.lane.b32.xlu0 %v221, 96
    %v232 = vpop.permute.xlu0 %231
    %233 = vrot.lane.b32.xlu0 %v226, 96
    %v234 = vpop.permute.xlu0 %233
    %vm235 = vcmask 130048
    %v236 = vsel %vm235, %v221, 0
    %v238 = vsel %vm235, %v226, 0
    %v240 = vsel %vm235, %v232, 0
    %v242 = vsel %vm235, %v234, 0
    %244 = vmatprep.subr.mxu0 0.0
    %245 = vmatpush1.xpose.msra.mxu0 %v240
    %246 = vmatprep.subr.mxu0 0.0
    %247 = vmatpush1.xpose.msra.mxu0 %v242
    %248 = vmatprep.subr.mxu0 0.0
    %249 = vmatpush1.xpose.msra.mxu0 0.0
    %250 = vmatprep.subr.mxu0 0.0
    %251 = vmatpush1.xpose.msra.mxu0 0.0
    %252 = vmatprep.subr.mxu0 0.0
    %253 = vmatpush1.xpose.msra.mxu0 0.0
    %254 = vmatprep.subr.mxu0 0.0
    %255 = vmatpush1.xpose.msra.mxu0 0.0
    %256 = vmatprep.subr.mxu0 0.0
    %257 = vmatpush1.xpose.msra.mxu0 0.0
    %258 = vmatprep.subr.mxu0 0.0
    %259 = vmatpush1.xpose.msra.mxu0 0.0
    %260 = vmatprep.subr.mxu0 0.0
    %261 = vmatpush1.xpose.msra.mxu0 0.0
    %262 = vmatprep.subr.mxu0 0.0
    %263 = vmatpush1.xpose.msra.mxu0 0.0
    %264 = vmatprep.subr.mxu0 0.0
    %265 = vmatpush1.xpose.msra.mxu0 0.0
    %266 = vmatprep.subr.mxu0 0.0
    %267 = vmatpush1.xpose.msra.mxu0 0.0
    %268 = vmatprep.subr.mxu0 0.0
    %269 = vmatpush1.xpose.msra.mxu0 0.0
    %270 = vmatprep.subr.mxu0 0.0
    %271 = vmatpush1.xpose.msra.mxu0 0.0
    %272 = vmatprep.subr.mxu0 0.0
    %273 = vmatpush1.xpose.msra.mxu0 0.0
    %274 = vmatprep.subr.mxu0 0.0
    %275 = vmatpush1.xpose.msra.mxu0 0.0
    %276 = vmatprep.subr.mxu0 0.0
    %277 = vmatpush1.xpose.msra.mxu0 0.0
    %278 = vmatprep.subr.mxu0 0.0
    %279 = vmatpush1.xpose.msra.mxu0 0.0
    %280 = vmatprep.subr.mxu0 0.0
    %281 = vmatpush1.xpose.msra.mxu0 0.0
    %282 = vmatprep.subr.mxu0 0.0
    %283 = vmatpush1.xpose.msra.mxu0 0.0
    %284 = vmatprep.subr.mxu0 0.0
    %285 = vmatpush1.xpose.msra.mxu0 0.0
    %286 = vmatprep.subr.mxu0 0.0
    %287 = vmatpush1.xpose.msra.mxu0 0.0
    %288 = vmatprep.subr.mxu0 0.0
    %289 = vmatpush1.xpose.msra.mxu0 0.0
    %290 = vmatprep.subr.mxu0 0.0
    %291 = vmatpush1.xpose.msra.mxu0 0.0
    %292 = vmatprep.subr.mxu0 0.0
    %293 = vmatpush1.xpose.msra.mxu0 0.0
    %294 = vmatprep.subr.mxu0 0.0
    %295 = vmatpush1.xpose.msra.mxu0 0.0
    %296 = vmatprep.subr.mxu0 0.0
    %297 = vmatpush1.xpose.msra.mxu0 0.0
    %298 = vmatprep.subr.mxu0 0.0
    %299 = vmatpush1.xpose.msra.mxu0 0.0
    %300 = vmatprep.subr.mxu0 0.0
    %301 = vmatpush1.xpose.msra.mxu0 0.0
    %302 = vmatprep.subr.mxu0 0.0
    %303 = vmatpush1.xpose.msra.mxu0 0.0
    %304 = vmatprep.subr.mxu0 0.0
    %305 = vmatpush1.xpose.msra.mxu0 0.0
    %306 = vmatprep.subr.mxu0 0.0
    %307 = vmatpush1.xpose.msra.mxu0 0.0
    %308 = vmatprep.mubr.f32.mxu0 0.0
    %309 = vmatmul.mubr.f32.gmra.mrb[0].mxu0 %v236
    %v310 = vpop.f32.mrb[0].mxu0
    %v311 = vadd.f32 0.0, %v310
    %v312 = vpop.f32.mrb[0].mxu0
    %313 = vmatprep.mubr.f32.mxu0 0.0
    %314 = vmatmul.mubr.f32.gmra.mrb[0].mxu0 %v238
    %v315 = vpop.f32.mrb[0].mxu0
    %v316 = vadd.f32 0.0, %v315
    %v317 = vpop.f32.mrb[0].mxu0
    %318 = vdwg.mxu0
    %v319 = vmul.f32 %v311, 0.25
    %v320 = vmul.f32 %v316, 0.25
    %v321 = vadd.f32 %v319, %v137
    %v322 = vadd.f32 %v320, %v138
    %v323 = vsel %vm235, %v321, -inf
    %324 = vmax.xlane.f32.xlu0 %v323
    %v325 = vpop.xlane.xlu0 %324
    %v326 = vsel %vm235, %v322, -inf
    %327 = vmax.xlane.f32.xlu0 %v326
    %v328 = vpop.xlane.xlu0 %327
    %v329 = vsub.f32 %v321, %v325
    %v330 = vsub.f32 %v322, %v328
    %v331 = vmul.f32 %v329, 1.442695
    %v332 = vpow.pop %v331
    %v333 = vmul.f32 %v330, 1.442695
    %v334 = vpow.pop %v333
    %v335 = vsel %vm235, %v332, 0.0
    %336 = vadd.xlane.f32.xlu0 %v335
    %v337 = vpop.xlane.xlu0 %336
    %v338 = vsel %vm235, %v334, 0.0
    %339 = vadd.xlane.f32.xlu0 %v338
    %v340 = vpop.xlane.xlu0 %339
    %v341 = vrcp.pop %v337
    %v342 = vmul.f32 %v332, %v341
    %v343 = vrcp.pop %v340
    %v344 = vmul.f32 %v334, %v343
    %345 = vrot.lane.b32.xlu0 %v221, 64
    %v346 = vpop.permute.xlu0 %345
    %347 = vrot.lane.b32.xlu0 %v226, 64
    %v348 = vpop.permute.xlu0 %347
    %v352 = vsel %vm235, %v342, 0
    %v355 = vsel %vm235, %v344, 0
    %357 = vmatprep.subr.mxu0 0.0
    %358 = vmatpush1.msra.mxu0 %v346
    %359 = vmatprep.subr.mxu0 0.0
    %360 = vmatpush1.msra.mxu0 %v348
    %361 = vmatprep.subr.mxu0 0.0
    %362 = vmatpush1.msra.mxu0 0.0
    %363 = vmatprep.subr.mxu0 0.0
    %364 = vmatpush1.msra.mxu0 0.0
    %365 = vmatprep.subr.mxu0 0.0
    %366 = vmatpush1.msra.mxu0 0.0
    %367 = vmatprep.subr.mxu0 0.0
    %368 = vmatpush1.msra.mxu0 0.0
    %369 = vmatprep.subr.mxu0 0.0
    %370 = vmatpush1.msra.mxu0 0.0
    %371 = vmatprep.subr.mxu0 0.0
    %372 = vmatpush1.msra.mxu0 0.0
    %373 = vmatprep.subr.mxu0 0.0
    %374 = vmatpush1.msra.mxu0 0.0
    %375 = vmatprep.subr.mxu0 0.0
    %376 = vmatpush1.msra.mxu0 0.0
    %377 = vmatprep.subr.mxu0 0.0
    %378 = vmatpush1.msra.mxu0 0.0
    %379 = vmatprep.subr.mxu0 0.0
    %380 = vmatpush1.msra.mxu0 0.0
    %381 = vmatprep.subr.mxu0 0.0
    %382 = vmatpush1.msra.mxu0 0.0
    %383 = vmatprep.subr.mxu0 0.0
    %384 = vmatpush1.msra.mxu0 0.0
    %385 = vmatprep.subr.mxu0 0.0
    %386 = vmatpush1.msra.mxu0 0.0
    %387 = vmatprep.subr.mxu0 0.0
    %388 = vmatpush1.msra.mxu0 0.0
    %389 = vmatprep.subr.mxu0 0.0
    %390 = vmatpush1.msra.mxu0 0.0
    %391 = vmatprep.subr.mxu0 0.0
    %392 = vmatpush1.msra.mxu0 0.0
    %393 = vmatprep.subr.mxu0 0.0
    %394 = vmatpush1.msra.mxu0 0.0
    %395 = vmatprep.subr.mxu0 0.0
    %396 = vmatpush1.msra.mxu0 0.0
    %397 = vmatprep.subr.mxu0 0.0
    %398 = vmatpush1.msra.mxu0 0.0
    %399 = vmatprep.subr.mxu0 0.0
    %400 = vmatpush1.msra.mxu0 0.0
    %401 = vmatprep.subr.mxu0 0.0
    %402 = vmatpush1.msra.mxu0 0.0
    %403 = vmatprep.subr.mxu0 0.0
    %404 = vmatpush1.msra.mxu0 0.0
    %405 = vmatprep.subr.mxu0 0.0
    %406 = vmatpush1.msra.mxu0 0.0
    %407 = vmatprep.subr.mxu0 0.0
    %408 = vmatpush1.msra.mxu0 0.0
    %409 = vmatprep.subr.mxu0 0.0
    %410 = vmatpush1.msra.mxu0 0.0
    %411 = vmatprep.subr.mxu0 0.0
    %412 = vmatpush1.msra.mxu0 0.0
    %413 = vmatprep.subr.mxu0 0.0
    %414 = vmatpush1.msra.mxu0 0.0
    %415 = vmatprep.subr.mxu0 0.0
    %416 = vmatpush1.msra.mxu0 0.0
    %417 = vmatprep.subr.mxu0 0.0
    %418 = vmatpush1.msra.mxu0 0.0
    %419 = vmatprep.subr.mxu0 0.0
    %420 = vmatpush1.msra.mxu0 0.0
    %421 = vmatprep.mubr.f32.mxu0 0.0
    %422 = vmatmul.mubr.f32.gmra.mrb[0].mxu0 %v352
    %v423 = vpop.f32.mrb[0].mxu0
    %v424 = vadd.f32 0.0, %v423
    %v425 = vpop.f32.mrb[0].mxu0
    %426 = vmatprep.mubr.f32.mxu0 0.0
    %427 = vmatmul.mubr.f32.gmra.mrb[0].mxu0 %v355
    %v428 = vpop.f32.mrb[0].mxu0
    %v429 = vadd.f32 0.0, %v428
    %v430 = vpop.f32.mrb[0].mxu0
    %431 = vdwg.mxu0
    %v432 = vld [vmem:[#allocation5 + $0x28] sm:$0xff]
    %v433 = vld [vmem:[#allocation5 + $0x30] sm:$0xff]
    %434 = vrot.lane.b32.xlu0 %v221, 112
    %v435 = vpop.permute.xlu0 %434
    %436 = vrot.lane.b32.xlu0 %v226, 112
    %v437 = vpop.permute.xlu0 %436
    %438 = vrot.lane.b32.xlu0 %v221, 80
    %v439 = vpop.permute.xlu0 %438
    %440 = vrot.lane.b32.xlu0 %v226, 80
    %v441 = vpop.permute.xlu0 %440
    %v442 = vsel %vm235, %v435, 0
    %v444 = vsel %vm235, %v437, 0
    %v446 = vsel %vm235, %v439, 0
    %v448 = vsel %vm235, %v441, 0
    %450 = vmatprep.subr.mxu0 0.0
    %451 = vmatpush1.xpose.msra.mxu0 %v446
    %452 = vmatprep.subr.mxu0 0.0
    %453 = vmatpush1.xpose.msra.mxu0 %v448
    %454 = vmatprep.subr.mxu0 0.0
    %455 = vmatpush1.xpose.msra.mxu0 0.0
    %456 = vmatprep.subr.mxu0 0.0
    %457 = vmatpush1.xpose.msra.mxu0 0.0
    %458 = vmatprep.subr.mxu0 0.0
    %459 = vmatpush1.xpose.msra.mxu0 0.0
    %460 = vmatprep.subr.mxu0 0.0
    %461 = vmatpush1.xpose.msra.mxu0 0.0
    %462 = vmatprep.subr.mxu0 0.0
    %463 = vmatpush1.xpose.msra.mxu0 0.0
    %464 = vmatprep.subr.mxu0 0.0
    %465 = vmatpush1.xpose.msra.mxu0 0.0
    %466 = vmatprep.subr.mxu0 0.0
    %467 = vmatpush1.xpose.msra.mxu0 0.0
    %468 = vmatprep.subr.mxu0 0.0
    %469 = vmatpush1.xpose.msra.mxu0 0.0
    %470 = vmatprep.subr.mxu0 0.0
    %471 = vmatpush1.xpose.msra.mxu0 0.0
    %472 = vmatprep.subr.mxu0 0.0
    %473 = vmatpush1.xpose.msra.mxu0 0.0
    %474 = vmatprep.subr.mxu0 0.0
    %475 = vmatpush1.xpose.msra.mxu0 0.0
    %476 = vmatprep.subr.mxu0 0.0
    %477 = vmatpush1.xpose.msra.mxu0 0.0
    %478 = vmatprep.subr.mxu0 0.0
    %479 = vmatpush1.xpose.msra.mxu0 0.0
    %480 = vmatprep.subr.mxu0 0.0
    %481 = vmatpush1.xpose.msra.mxu0 0.0
    %482 = vmatprep.subr.mxu0 0.0
    %483 = vmatpush1.xpose.msra.mxu0 0.0
    %484 = vmatprep.subr.mxu0 0.0
    %485 = vmatpush1.xpose.msra.mxu0 0.0
    %486 = vmatprep.subr.mxu0 0.0
    %487 = vmatpush1.xpose.msra.mxu0 0.0
    %488 = vmatprep.subr.mxu0 0.0
    %489 = vmatpush1.xpose.msra.mxu0 0.0
    %490 = vmatprep.subr.mxu0 0.0
    %491 = vmatpush1.xpose.msra.mxu0 0.0
    %492 = vmatprep.subr.mxu0 0.0
    %493 = vmatpush1.xpose.msra.mxu0 0.0
    %494 = vmatprep.subr.mxu0 0.0
    %495 = vmatpush1.xpose.msra.mxu0 0.0
    %496 = vmatprep.subr.mxu0 0.0
    %497 = vmatpush1.xpose.msra.mxu0 0.0
    %498 = vmatprep.subr.mxu0 0.0
    %499 = vmatpush1.xpose.msra.mxu0 0.0
    %500 = vmatprep.subr.mxu0 0.0
    %501 = vmatpush1.xpose.msra.mxu0 0.0
    %502 = vmatprep.subr.mxu0 0.0
    %503 = vmatpush1.xpose.msra.mxu0 0.0
    %504 = vmatprep.subr.mxu0 0.0
    %505 = vmatpush1.xpose.msra.mxu0 0.0
    %506 = vmatprep.subr.mxu0 0.0
    %507 = vmatpush1.xpose.msra.mxu0 0.0
    %508 = vmatprep.subr.mxu0 0.0
    %509 = vmatpush1.xpose.msra.mxu0 0.0
    %510 = vmatprep.subr.mxu0 0.0
    %511 = vmatpush1.xpose.msra.mxu0 0.0
    %512 = vmatprep.subr.mxu0 0.0
    %513 = vmatpush1.xpose.msra.mxu0 0.0
    %514 = vmatprep.mubr.f32.mxu0 0.0
    %515 = vmatmul.mubr.f32.gmra.mrb[0].mxu0 %v442
    %v516 = vpop.f32.mrb[0].mxu0
    %v517 = vadd.f32 0.0, %v516
    %v518 = vpop.f32.mrb[0].mxu0
    %519 = vmatprep.mubr.f32.mxu0 0.0
    %520 = vmatmul.mubr.f32.gmra.mrb[0].mxu0 %v444
    %v521 = vpop.f32.mrb[0].mxu0
    %v522 = vadd.f32 0.0, %v521
    %v523 = vpop.f32.mrb[0].mxu0
    %524 = vdwg.mxu0
    %v525 = vmul.f32 %v517, 0.25
    %v526 = vmul.f32 %v522, 0.25
    %v527 = vadd.f32 %v525, %v137
    %v528 = vadd.f32 %v526, %v138
    %v529 = vsel %vm235, %v527, -inf
    %530 = vmax.xlane.f32.xlu0 %v529
    %v531 = vpop.xlane.xlu0 %530
    %v532 = vsel %vm235, %v528, -inf
    %533 = vmax.xlane.f32.xlu0 %v532
    %v534 = vpop.xlane.xlu0 %533
    %v535 = vsub.f32 %v527, %v531
    %v536 = vsub.f32 %v528, %v534
    %v537 = vmul.f32 %v535, 1.442695
    %v538 = vpow.pop %v537
    %v539 = vmul.f32 %v536, 1.442695
    %v540 = vpow.pop %v539
    %v541 = vsel %vm235, %v538, 0.0
    %542 = vadd.xlane.f32.xlu0 %v541
    %v543 = vpop.xlane.xlu0 %542
    %v544 = vsel %vm235, %v540, 0.0
    %545 = vadd.xlane.f32.xlu0 %v544
    %v546 = vpop.xlane.xlu0 %545
    %v547 = vrcp.pop %v543
    %v548 = vmul.f32 %v538, %v547
    %v549 = vrcp.pop %v546
    %v550 = vmul.f32 %v540, %v549
    %551 = vrot.lane.b32.xlu0 %v221, 48
    %v552 = vpop.permute.xlu0 %551
    %553 = vrot.lane.b32.xlu0 %v226, 48
    %v554 = vpop.permute.xlu0 %553
    %v558 = vsel %vm235, %v548, 0
    %v561 = vsel %vm235, %v550, 0
    %563 = vmatprep.subr.mxu0 0.0
    %564 = vmatpush1.msra.mxu0 %v552
    %565 = vmatprep.subr.mxu0 0.0
    %566 = vmatpush1.msra.mxu0 %v554
    %567 = vmatprep.subr.mxu0 0.0
    %568 = vmatpush1.msra.mxu0 0.0
    %569 = vmatprep.subr.mxu0 0.0
    %570 = vmatpush1.msra.mxu0 0.0
    %571 = vmatprep.subr.mxu0 0.0
    %572 = vmatpush1.msra.mxu0 0.0
    %573 = vmatprep.subr.mxu0 0.0
    %574 = vmatpush1.msra.mxu0 0.0
    %575 = vmatprep.subr.mxu0 0.0
    %576 = vmatpush1.msra.mxu0 0.0
    %577 = vmatprep.subr.mxu0 0.0
    %578 = vmatpush1.msra.mxu0 0.0
    %579 = vmatprep.subr.mxu0 0.0
    %580 = vmatpush1.msra.mxu0 0.0
    %581 = vmatprep.subr.mxu0 0.0
    %582 = vmatpush1.msra.mxu0 0.0
    %583 = vmatprep.subr.mxu0 0.0
    %584 = vmatpush1.msra.mxu0 0.0
    %585 = vmatprep.subr.mxu0 0.0
    %586 = vmatpush1.msra.mxu0 0.0
    %587 = vmatprep.subr.mxu0 0.0
    %588 = vmatpush1.msra.mxu0 0.0
    %589 = vmatprep.subr.mxu0 0.0
    %590 = vmatpush1.msra.mxu0 0.0
    %591 = vmatprep.subr.mxu0 0.0
    %592 = vmatpush1.msra.mxu0 0.0
    %593 = vmatprep.subr.mxu0 0.0
    %594 = vmatpush1.msra.mxu0 0.0
    %595 = vmatprep.subr.mxu0 0.0
    %596 = vmatpush1.msra.mxu0 0.0
    %597 = vmatprep.subr.mxu0 0.0
    %598 = vmatpush1.msra.mxu0 0.0
    %599 = vmatprep.subr.mxu0 0.0
    %600 = vmatpush1.msra.mxu0 0.0
    %601 = vmatprep.subr.mxu0 0.0
    %602 = vmatpush1.msra.mxu0 0.0
    %603 = vmatprep.subr.mxu0 0.0
    %604 = vmatpush1.msra.mxu0 0.0
    %605 = vmatprep.subr.mxu0 0.0
    %606 = vmatpush1.msra.mxu0 0.0
    %607 = vmatprep.subr.mxu0 0.0
    %608 = vmatpush1.msra.mxu0 0.0
    %609 = vmatprep.subr.mxu0 0.0
    %610 = vmatpush1.msra.mxu0 0.0
    %611 = vmatprep.subr.mxu0 0.0
    %612 = vmatpush1.msra.mxu0 0.0
    %613 = vmatprep.subr.mxu0 0.0
    %614 = vmatpush1.msra.mxu0 0.0
    %615 = vmatprep.subr.mxu0 0.0
    %616 = vmatpush1.msra.mxu0 0.0
    %617 = vmatprep.subr.mxu0 0.0
    %618 = vmatpush1.msra.mxu0 0.0
    %619 = vmatprep.subr.mxu0 0.0
    %620 = vmatpush1.msra.mxu0 0.0
    %621 = vmatprep.subr.mxu0 0.0
    %622 = vmatpush1.msra.mxu0 0.0
    %623 = vmatprep.subr.mxu0 0.0
    %624 = vmatpush1.msra.mxu0 0.0
    %625 = vmatprep.subr.mxu0 0.0
    %626 = vmatpush1.msra.mxu0 0.0
    %627 = vmatprep.mubr.f32.mxu0 0.0
    %628 = vmatmul.mubr.f32.gmra.mrb[0].mxu0 %v558
    %v629 = vpop.f32.mrb[0].mxu0
    %v630 = vadd.f32 0.0, %v629
    %v631 = vpop.f32.mrb[0].mxu0
    %632 = vmatprep.mubr.f32.mxu0 0.0
    %633 = vmatmul.mubr.f32.gmra.mrb[0].mxu0 %v561
    %v634 = vpop.f32.mrb[0].mxu0
    %v635 = vadd.f32 0.0, %v634
    %v636 = vpop.f32.mrb[0].mxu0
    %637 = vdwg.mxu0
    %v638 = vld [vmem:[#allocation5 + $0x38] sm:$0xff]
    %v639 = vld [vmem:[#allocation5 + $0x40] sm:$0xff]
    %v641 = vsel %vm235, %v630, 0
    %v644 = vsel %vm235, %v635, 0
    %646 = vmatprep.subr.mxu0 0.0
    %647 = vmatpush1.msra.mxu0 %v638
    %648 = vmatprep.subr.mxu0 0.0
    %649 = vmatpush1.msra.mxu0 %v639
    %650 = vmatprep.subr.mxu0 0.0
    %651 = vmatpush1.msra.mxu0 0.0
    %652 = vmatprep.subr.mxu0 0.0
    %653 = vmatpush1.msra.mxu0 0.0
    %654 = vmatprep.subr.mxu0 0.0
    %655 = vmatpush1.msra.mxu0 0.0
    %656 = vmatprep.subr.mxu0 0.0
    %657 = vmatpush1.msra.mxu0 0.0
    %658 = vmatprep.subr.mxu0 0.0
    %659 = vmatpush1.msra.mxu0 0.0
    %660 = vmatprep.subr.mxu0 0.0
    %661 = vmatpush1.msra.mxu0 0.0
    %662 = vmatprep.subr.mxu0 0.0
    %663 = vmatpush1.msra.mxu0 0.0
    %664 = vmatprep.subr.mxu0 0.0
    %665 = vmatpush1.msra.mxu0 0.0
    %666 = vmatprep.subr.mxu0 0.0
    %667 = vmatpush1.msra.mxu0 0.0
    %668 = vmatprep.subr.mxu0 0.0
    %669 = vmatpush1.msra.mxu0 0.0
    %670 = vmatprep.subr.mxu0 0.0
    %671 = vmatpush1.msra.mxu0 0.0
    %672 = vmatprep.subr.mxu0 0.0
    %673 = vmatpush1.msra.mxu0 0.0
    %674 = vmatprep.subr.mxu0 0.0
    %675 = vmatpush1.msra.mxu0 0.0
    %676 = vmatprep.subr.mxu0 0.0
    %677 = vmatpush1.msra.mxu0 0.0
    %678 = vmatprep.subr.mxu0 0.0
    %679 = vmatpush1.msra.mxu0 0.0
    %680 = vmatprep.subr.mxu0 0.0
    %681 = vmatpush1.msra.mxu0 0.0
    %682 = vmatprep.subr.mxu0 0.0
    %683 = vmatpush1.msra.mxu0 0.0
    %684 = vmatprep.subr.mxu0 0.0
    %685 = vmatpush1.msra.mxu0 0.0
    %686 = vmatprep.subr.mxu0 0.0
    %687 = vmatpush1.msra.mxu0 0.0
    %688 = vmatprep.subr.mxu0 0.0
    %689 = vmatpush1.msra.mxu0 0.0
    %690 = vmatprep.subr.mxu0 0.0
    %691 = vmatpush1.msra.mxu0 0.0
    %692 = vmatprep.subr.mxu0 0.0
    %693 = vmatpush1.msra.mxu0 0.0
    %694 = vmatprep.subr.mxu0 0.0
    %695 = vmatpush1.msra.mxu0 0.0
    %696 = vmatprep.subr.mxu0 0.0
    %697 = vmatpush1.msra.mxu0 0.0
    %698 = vmatprep.subr.mxu0 0.0
    %699 = vmatpush1.msra.mxu0 0.0
    %700 = vmatprep.subr.mxu0 0.0
    %701 = vmatpush1.msra.mxu0 0.0
    %702 = vmatprep.subr.mxu0 0.0
    %703 = vmatpush1.msra.mxu0 0.0
    %704 = vmatprep.subr.mxu0 0.0
    %705 = vmatpush1.msra.mxu0 0.0
    %706 = vmatprep.subr.mxu0 0.0
    %707 = vmatpush1.msra.mxu0 0.0
    %708 = vmatprep.subr.mxu0 0.0
    %709 = vmatpush1.msra.mxu0 0.0
    %710 = vmatprep.mubr.f32.mxu0 0.0
    %711 = vmatmul.mubr.f32.gmra.mrb[0].mxu0 %v641
    %v712 = vpop.f32.mrb[0].mxu0
    %v713 = vadd.f32 0.0, %v712
    %v714 = vpop.f32.mrb[0].mxu0
    %715 = vmatprep.mubr.f32.mxu0 0.0
    %716 = vmatmul.mubr.f32.gmra.mrb[0].mxu0 %v644
    %v717 = vpop.f32.mrb[0].mxu0
    %v718 = vadd.f32 0.0, %v717
    %v719 = vpop.f32.mrb[0].mxu0
    %720 = vdwg.mxu0
    %v722 = vsel %vm235, %v424, 0
    %v725 = vsel %vm235, %v429, 0
    %727 = vmatprep.subr.mxu0 0.0
    %728 = vmatpush1.msra.mxu0 %v432
    %729 = vmatprep.subr.mxu0 0.0
    %730 = vmatpush1.msra.mxu0 %v433
    %731 = vmatprep.subr.mxu0 0.0
    %732 = vmatpush1.msra.mxu0 0.0
    %733 = vmatprep.subr.mxu0 0.0
    %734 = vmatpush1.msra.mxu0 0.0
    %735 = vmatprep.subr.mxu0 0.0
    %736 = vmatpush1.msra.mxu0 0.0
    %737 = vmatprep.subr.mxu0 0.0
    %738 = vmatpush1.msra.mxu0 0.0
    %739 = vmatprep.subr.mxu0 0.0
    %740 = vmatpush1.msra.mxu0 0.0
    %741 = vmatprep.subr.mxu0 0.0
    %742 = vmatpush1.msra.mxu0 0.0
    %743 = vmatprep.subr.mxu0 0.0
    %744 = vmatpush1.msra.mxu0 0.0
    %745 = vmatprep.subr.mxu0 0.0
    %746 = vmatpush1.msra.mxu0 0.0
    %747 = vmatprep.subr.mxu0 0.0
    %748 = vmatpush1.msra.mxu0 0.0
    %749 = vmatprep.subr.mxu0 0.0
    %750 = vmatpush1.msra.mxu0 0.0
    %751 = vmatprep.subr.mxu0 0.0
    %752 = vmatpush1.msra.mxu0 0.0
    %753 = vmatprep.subr.mxu0 0.0
    %754 = vmatpush1.msra.mxu0 0.0
    %755 = vmatprep.subr.mxu0 0.0
    %756 = vmatpush1.msra.mxu0 0.0
    %757 = vmatprep.subr.mxu0 0.0
    %758 = vmatpush1.msra.mxu0 0.0
    %759 = vmatprep.subr.mxu0 0.0
    %760 = vmatpush1.msra.mxu0 0.0
    %761 = vmatprep.subr.mxu0 0.0
    %762 = vmatpush1.msra.mxu0 0.0
    %763 = vmatprep.subr.mxu0 0.0
    %764 = vmatpush1.msra.mxu0 0.0
    %765 = vmatprep.subr.mxu0 0.0
    %766 = vmatpush1.msra.mxu0 0.0
    %767 = vmatprep.subr.mxu0 0.0
    %768 = vmatpush1.msra.mxu0 0.0
    %769 = vmatprep.subr.mxu0 0.0
    %770 = vmatpush1.msra.mxu0 0.0
    %771 = vmatprep.subr.mxu0 0.0
    %772 = vmatpush1.msra.mxu0 0.0
    %773 = vmatprep.subr.mxu0 0.0
    %774 = vmatpush1.msra.mxu0 0.0
    %775 = vmatprep.subr.mxu0 0.0
    %776 = vmatpush1.msra.mxu0 0.0
    %777 = vmatprep.subr.mxu0 0.0
    %778 = vmatpush1.msra.mxu0 0.0
    %779 = vmatprep.subr.mxu0 0.0
    %780 = vmatpush1.msra.mxu0 0.0
    %781 = vmatprep.subr.mxu0 0.0
    %782 = vmatpush1.msra.mxu0 0.0
    %783 = vmatprep.subr.mxu0 0.0
    %784 = vmatpush1.msra.mxu0 0.0
    %785 = vmatprep.subr.mxu0 0.0
    %786 = vmatpush1.msra.mxu0 0.0
    %787 = vmatprep.subr.mxu0 0.0
    %788 = vmatpush1.msra.mxu0 0.0
    %789 = vmatprep.subr.mxu0 0.0
    %790 = vmatpush1.msra.mxu0 0.0
    %791 = vmatprep.mubr.f32.mxu0 0.0
    %792 = vmatmul.mubr.f32.gmra.mrb[0].mxu0 %v722
    %v793 = vpop.f32.mrb[0].mxu0
    %v794 = vadd.f32 %v713, %v793
    %v795 = vpop.f32.mrb[0].mxu0
    %796 = vmatprep.mubr.f32.mxu0 0.0
    %797 = vmatmul.mubr.f32.gmra.mrb[0].mxu0 %v725
    %v798 = vpop.f32.mrb[0].mxu0
    %v799 = vadd.f32 %v718, %v798
    %v800 = vpop.f32.mrb[0].mxu0
    %801 = vdwg.mxu0
    %v802 = vld [vmem:[#allocation5 + $0xa9] sm:$0x1]
    %v803 = vlaneseq
    %v804 = vshrl.u32 %v803, 7
    %v805 = vsub.s32 0, %v804
    %v806 = vrot.slane %v802, %v805
    %v807 = vadd.f32 %v794, %v806
    %v808 = vadd.f32 %v799, %v806
    %v809 = vadd.f32 %v85, %v807
    %v810 = vadd.f32 %v86, %v808
    %v811 = vld [vmem:[#allocation5 + $0xaa] sm:$0x1]
    %v812 = vld [vmem:[#allocation5 + $0xab] sm:$0x1]
    %v813 = vsel %vm47, %v809, 0.0
    %814 = vadd.xlane.f32.xlu0 %v813
    %v815 = vpop.xlane.xlu0 %814
    %v816 = vsel %vm47, %v810, 0.0
    %817 = vadd.xlane.f32.xlu0 %v816
    %v818 = vpop.xlane.xlu0 %817
    %v819 = vmul.f32 %v815, %v54
    %v820 = vmul.f32 %v818, %v54
    %v821 = vsub.f32 %v809, %v819
    %v822 = vsub.f32 %v810, %v820
    %v823 = vmul.f32 %v821, %v821
    %v824 = vmul.f32 %v822, %v822
    %v825 = vsel %vm47, %v823, 0.0
    %826 = vadd.xlane.f32.xlu0 %v825
    %v827 = vpop.xlane.xlu0 %826
    %v828 = vsel %vm47, %v824, 0.0
    %829 = vadd.xlane.f32.xlu0 %v828
    %v830 = vpop.xlane.xlu0 %829
    %v831 = vmul.f32 %v827, %v54
    %v832 = vmul.f32 %v830, %v54
    %v833 = vadd.f32 %v831, 1e-12
    %v834 = vadd.f32 %v832, 1e-12
    %v835 = vrsqrt.pop %v833
    %v836 = vrsqrt.pop %v834
    %v837 = vmul.f32 %v821, %v835
    %v838 = vmul.f32 %v822, %v836
    %v839 = vlaneseq
    %v840 = vshrl.u32 %v839, 7
    %v841 = vsub.s32 0, %v840
    %v842 = vrot.slane %v811, %v841
    %v843 = vmul.f32 %v837, %v842
    %v844 = vmul.f32 %v838, %v842
    %v845 = vlaneseq
    %v846 = vshrl.u32 %v845, 7
    %v847 = vsub.s32 0, %v846
    %v848 = vrot.slane %v812, %v847
    %v849 = vadd.f32 %v843, %v848
    %v850 = vadd.f32 %v844, %v848
    %v851 = vld [vmem:[#allocation5 + $0x48] sm:$0xff]
    %v852 = vld [vmem:[#allocation5 + $0x50] sm:$0xff]
    %v853 = vld [vmem:[#allocation5 + $0x58] sm:$0xff]
    %v854 = vld [vmem:[#allocation5 + $0x60] sm:$0xff]
    %v855 = vld [vmem:[#allocation5 + $0xac] sm:$0x1]
    %v856 = vlaneseq
    %v857 = vshrl.u32 %v856, 7
    %v858 = vsub.s32 0, %v857
    %v859 = vrot.slane %v855, %v858
    %v861 = vsel %vm47, %v849, 0
    %v864 = vsel %vm47, %v850, 0
    %866 = vmatprep.subr.mxu0 0.0
    %867 = vmatpush1.msra.mxu0 %v851
    %868 = vmatprep.subr.mxu0 0.0
    %869 = vmatpush1.msra.mxu0 %v852
    %870 = vmatprep.subr.mxu0 0.0
    %871 = vmatpush1.msra.mxu0 %v853
    %872 = vmatprep.subr.mxu0 0.0
    %873 = vmatpush1.msra.mxu0 %v854
    %874 = vmatprep.subr.mxu0 0.0
    %875 = vmatpush1.msra.mxu0 0.0
    %876 = vmatprep.subr.mxu0 0.0
    %877 = vmatpush1.msra.mxu0 0.0
    %878 = vmatprep.subr.mxu0 0.0
    %879 = vmatpush1.msra.mxu0 0.0
    %880 = vmatprep.subr.mxu0 0.0
    %881 = vmatpush1.msra.mxu0 0.0
    %882 = vmatprep.subr.mxu0 0.0
    %883 = vmatpush1.msra.mxu0 0.0
    %884 = vmatprep.subr.mxu0 0.0
    %885 = vmatpush1.msra.mxu0 0.0
    %886 = vmatprep.subr.mxu0 0.0
    %887 = vmatpush1.msra.mxu0 0.0
    %888 = vmatprep.subr.mxu0 0.0
    %889 = vmatpush1.msra.mxu0 0.0
    %890 = vmatprep.subr.mxu0 0.0
    %891 = vmatpush1.msra.mxu0 0.0
    %892 = vmatprep.subr.mxu0 0.0
    %893 = vmatpush1.msra.mxu0 0.0
    %894 = vmatprep.subr.mxu0 0.0
    %895 = vmatpush1.msra.mxu0 0.0
    %896 = vmatprep.subr.mxu0 0.0
    %897 = vmatpush1.msra.mxu0 0.0
    %898 = vmatprep.subr.mxu0 0.0
    %899 = vmatpush1.msra.mxu0 0.0
    %900 = vmatprep.subr.mxu0 0.0
    %901 = vmatpush1.msra.mxu0 0.0
    %902 = vmatprep.subr.mxu0 0.0
    %903 = vmatpush1.msra.mxu0 0.0
    %904 = vmatprep.subr.mxu0 0.0
    %905 = vmatpush1.msra.mxu0 0.0
    %906 = vmatprep.subr.mxu0 0.0
    %907 = vmatpush1.msra.mxu0 0.0
    %908 = vmatprep.subr.mxu0 0.0
    %909 = vmatpush1.msra.mxu0 0.0
    %910 = vmatprep.subr.mxu0 0.0
    %911 = vmatpush1.msra.mxu0 0.0
    %912 = vmatprep.subr.mxu0 0.0
    %913 = vmatpush1.msra.mxu0 0.0
    %914 = vmatprep.subr.mxu0 0.0
    %915 = vmatpush1.msra.mxu0 0.0
    %916 = vmatprep.subr.mxu0 0.0
    %917 = vmatpush1.msra.mxu0 0.0
    %918 = vmatprep.subr.mxu0 0.0
    %919 = vmatpush1.msra.mxu0 0.0
    %920 = vmatprep.subr.mxu0 0.0
    %921 = vmatpush1.msra.mxu0 0.0
    %922 = vmatprep.subr.mxu0 0.0
    %923 = vmatpush1.msra.mxu0 0.0
    %924 = vmatprep.subr.mxu0 0.0
    %925 = vmatpush1.msra.mxu0 0.0
    %926 = vmatprep.subr.mxu0 0.0
    %927 = vmatpush1.msra.mxu0 0.0
    %928 = vmatprep.subr.mxu0 0.0
    %929 = vmatpush1.msra.mxu0 0.0
    %930 = vmatprep.mubr.f32.mxu0 0.0
    %931 = vmatmul.mubr.f32.gmra.mrb[0].mxu0 %v861
    %v932 = vpop.f32.mrb[0].mxu0
    %v933 = vadd.f32 %v859, %v932
    %v934 = vpop.f32.mrb[0].mxu0
    %935 = vmatprep.mubr.f32.mxu0 0.0
    %936 = vmatmul.mubr.f32.gmra.mrb[0].mxu0 %v864
    %v937 = vpop.f32.mrb[0].mxu0
    %v938 = vadd.f32 %v859, %v937
    %v939 = vpop.f32.mrb[0].mxu0
    %940 = vdwg.mxu0
    %v941 = vmul.f32 %v933, %v933
    %v942 = vmul.f32 %v938, %v938
    %v943 = vmul.f32 %v933, %v941
    %v944 = vmul.f32 %v938, %v942
    %v945 = vmul.f32 %v943, 0.044715
    %v946 = vmul.f32 %v944, 0.044715
    %v947 = vadd.f32 %v933, %v945
    %v948 = vadd.f32 %v938, %v946
    %v949 = vmul.f32 %v947, 0.7978846
    %v950 = vmul.f32 %v948, 0.7978846
    %v951 = vtanh.pop %v949
    %v952 = vtanh.pop %v950
    %v953 = vadd.f32 %v951, 1.0
    %v954 = vadd.f32 %v952, 1.0
    %v955 = vmul.f32 %v953, 0.5
    %v956 = vmul.f32 %v954, 0.5
    %v957 = vmul.f32 %v933, %v955
    %v958 = vmul.f32 %v938, %v956
    %v959 = vld [vmem:[#allocation5 + $0x68] sm:$0xff]
    %v960 = vld [vmem:[#allocation5 + $0x70] sm:$0xff]
    %v961 = vld [vmem:[#allocation5 + $0x78] sm:$0xff]
    %v962 = vld [vmem:[#allocation5 + $0x80] sm:$0xff]
    %v963 = vld [vmem:[#allocation5 + $0x88] sm:$0xff]
    %v964 = vld [vmem:[#allocation5 + $0x90] sm:$0xff]
    %v965 = vld [vmem:[#allocation5 + $0x98] sm:$0xff]
    %v966 = vld [vmem:[#allocation5 + $0xa0] sm:$0xff]
    %v967 = vld [vmem:[#allocation5 + $0xad] sm:$0x1]
    %v968 = vlaneseq
    %v969 = vshrl.u32 %v968, 7
    %v970 = vsub.s32 0, %v969
    %v971 = vrot.slane %v967, %v970
    %vm972 = vcmask 523264
    %v974 = vsel %vm972, %v957, 0
    %v977 = vsel %vm972, %v958, 0
    %979 = vmatprep.subr.mxu0 0.0
    %980 = vmatpush1.msra.mxu0 %v959
    %981 = vmatprep.subr.mxu0 0.0
    %982 = vmatpush1.msra.mxu0 %v960
    %983 = vmatprep.subr.mxu0 0.0
    %984 = vmatpush1.msra.mxu0 %v961
    %985 = vmatprep.subr.mxu0 0.0
    %986 = vmatpush1.msra.mxu0 %v962
    %987 = vmatprep.subr.mxu0 0.0
    %988 = vmatpush1.msra.mxu0 %v963
    %989 = vmatprep.subr.mxu0 0.0
    %990 = vmatpush1.msra.mxu0 %v964
    %991 = vmatprep.subr.mxu0 0.0
    %992 = vmatpush1.msra.mxu0 %v965
    %993 = vmatprep.subr.mxu0 0.0
    %994 = vmatpush1.msra.mxu0 %v966
    %995 = vmatprep.subr.mxu0 0.0
    %996 = vmatpush1.msra.mxu0 0.0
    %997 = vmatprep.subr.mxu0 0.0
    %998 = vmatpush1.msra.mxu0 0.0
    %999 = vmatprep.subr.mxu0 0.0
    %1000 = vmatpush1.msra.mxu0 0.0
    %1001 = vmatprep.subr.mxu0 0.0
    %1002 = vmatpush1.msra.mxu0 0.0
    %1003 = vmatprep.subr.mxu0 0.0
    %1004 = vmatpush1.msra.mxu0 0.0
    %1005 = vmatprep.subr.mxu0 0.0
    %1006 = vmatpush1.msra.mxu0 0.0
    %1007 = vmatprep.subr.mxu0 0.0
    %1008 = vmatpush1.msra.mxu0 0.0
    %1009 = vmatprep.subr.mxu0 0.0
    %1010 = vmatpush1.msra.mxu0 0.0
    %1011 = vmatprep.subr.mxu0 0.0
    %1012 = vmatpush1.msra.mxu0 0.0
    %1013 = vmatprep.subr.mxu0 0.0
    %1014 = vmatpush1.msra.mxu0 0.0
    %1015 = vmatprep.subr.mxu0 0.0
    %1016 = vmatpush1.msra.mxu0 0.0
    %1017 = vmatprep.subr.mxu0 0.0
    %1018 = vmatpush1.msra.mxu0 0.0
    %1019 = vmatprep.subr.mxu0 0.0
    %1020 = vmatpush1.msra.mxu0 0.0
    %1021 = vmatprep.subr.mxu0 0.0
    %1022 = vmatpush1.msra.mxu0 0.0
    %1023 = vmatprep.subr.mxu0 0.0
    %1024 = vmatpush1.msra.mxu0 0.0
    %1025 = vmatprep.subr.mxu0 0.0
    %1026 = vmatpush1.msra.mxu0 0.0
    %1027 = vmatprep.subr.mxu0 0.0
    %1028 = vmatpush1.msra.mxu0 0.0
    %1029 = vmatprep.subr.mxu0 0.0
    %1030 = vmatpush1.msra.mxu0 0.0
    %1031 = vmatprep.subr.mxu0 0.0
    %1032 = vmatpush1.msra.mxu0 0.0
    %1033 = vmatprep.subr.mxu0 0.0
    %1034 = vmatpush1.msra.mxu0 0.0
    %1035 = vmatprep.subr.mxu0 0.0
    %1036 = vmatpush1.msra.mxu0 0.0
    %1037 = vmatprep.subr.mxu0 0.0
    %1038 = vmatpush1.msra.mxu0 0.0
    %1039 = vmatprep.subr.mxu0 0.0
    %1040 = vmatpush1.msra.mxu0 0.0
    %1041 = vmatprep.subr.mxu0 0.0
    %1042 = vmatpush1.msra.mxu0 0.0
    %1043 = vmatprep.mubr.f32.mxu0 0.0
    %1044 = vmatmul.mubr.f32.gmra.mrb[0].mxu0 %v974
    %v1045 = vpop.f32.mrb[0].mxu0
    %v1046 = vadd.f32 %v971, %v1045
    %v1047 = vpop.f32.mrb[0].mxu0
    %1048 = vmatprep.mubr.f32.mxu0 0.0
    %1049 = vmatmul.mubr.f32.gmra.mrb[0].mxu0 %v977
    %v1050 = vpop.f32.mrb[0].mxu0
    %v1051 = vadd.f32 %v971, %v1050
    %v1052 = vpop.f32.mrb[0].mxu0
    %1053 = vdwg.mxu0
    %v1054 = vadd.f32 %v849, %v1046
    %v1055 = vadd.f32 %v850, %v1051
    %v1056 = vld [vmem:[#allocation5 + $0xae] sm:$0x1]
    %v1057 = vld [vmem:[#allocation5 + $0xaf] sm:$0x1]
    %v1058 = vsel %vm47, %v1054, 0.0
    %1059 = vadd.xlane.f32.xlu0 %v1058
    %v1060 = vpop.xlane.xlu0 %1059
    %v1061 = vsel %vm47, %v1055, 0.0
    %1062 = vadd.xlane.f32.xlu0 %v1061
    %v1063 = vpop.xlane.xlu0 %1062
    %v1064 = vmul.f32 %v1060, %v54
    %v1065 = vmul.f32 %v1063, %v54
    %v1066 = vsub.f32 %v1054, %v1064
    %v1067 = vsub.f32 %v1055, %v1065
    %v1068 = vmul.f32 %v1066, %v1066
    %v1069 = vmul.f32 %v1067, %v1067
    %v1070 = vsel %vm47, %v1068, 0.0
    %1071 = vadd.xlane.f32.xlu0 %v1070
    %v1072 = vpop.xlane.xlu0 %1071
    %v1073 = vsel %vm47, %v1069, 0.0
    %1074 = vadd.xlane.f32.xlu0 %v1073
    %v1075 = vpop.xlane.xlu0 %1074
    %v1076 = vmul.f32 %v1072, %v54
    %v1077 = vmul.f32 %v1075, %v54
    %v1078 = vadd.f32 %v1076, 1e-12
    %v1079 = vadd.f32 %v1077, 1e-12
    %v1080 = vrsqrt.pop %v1078
    %v1081 = vrsqrt.pop %v1079
    %v1082 = vmul.f32 %v1066, %v1080
    %v1083 = vmul.f32 %v1067, %v1081
    %v1084 = vlaneseq
    %v1085 = vshrl.u32 %v1084, 7
    %v1086 = vsub.s32 0, %v1085
    %v1087 = vrot.slane %v1056, %v1086
    %v1088 = vmul.f32 %v1082, %v1087
    %v1089 = vmul.f32 %v1083, %v1087
    %v1090 = vlaneseq
    %v1091 = vshrl.u32 %v1090, 7
    %v1092 = vsub.s32 0, %v1091
    %v1093 = vrot.slane %v1057, %v1092
    %v1094 = vadd.f32 %v1088, %v1093
    %v1095 = vadd.f32 %v1089, %v1093
    %v1096 = vld [vmem:[#allocation5 + $0xb0] sm:$0xff]
    %v1097 = vld [vmem:[#allocation5 + $0xb8] sm:$0xff]
    %v1098 = vld [vmem:[#allocation5 + $0xc0] sm:$0xff]
    %v1099 = vld [vmem:[#allocation5 + $0xc8] sm:$0xff]
    %v1100 = vld [vmem:[#allocation5 + $0x150] sm:$0x1]
    %v1101 = vlaneseq
    %v1102 = vshrl.u32 %v1101, 7
    %v1103 = vsub.s32 0, %v1102
    %v1104 = vrot.slane %v1100, %v1103
    %v1106 = vsel %vm47, %v1094, 0
    %v1109 = vsel %vm47, %v1095, 0
    %1111 = vmatprep.subr.mxu0 0.0
    %1112 = vmatpush1.msra.mxu0 %v1096
    %1113 = vmatprep.subr.mxu0 0.0
    %1114 = vmatpush1.msra.mxu0 %v1097
    %1115 = vmatprep.subr.mxu0 0.0
    %1116 = vmatpush1.msra.mxu0 %v1098
    %1117 = vmatprep.subr.mxu0 0.0
    %1118 = vmatpush1.msra.mxu0 %v1099
    %1119 = vmatprep.subr.mxu0 0.0
    %1120 = vmatpush1.msra.mxu0 0.0
    %1121 = vmatprep.subr.mxu0 0.0
    %1122 = vmatpush1.msra.mxu0 0.0
    %1123 = vmatprep.subr.mxu0 0.0
    %1124 = vmatpush1.msra.mxu0 0.0
    %1125 = vmatprep.subr.mxu0 0.0
    %1126 = vmatpush1.msra.mxu0 0.0
    %1127 = vmatprep.subr.mxu0 0.0
    %1128 = vmatpush1.msra.mxu0 0.0
    %1129 = vmatprep.subr.mxu0 0.0
    %1130 = vmatpush1.msra.mxu0 0.0
    %1131 = vmatprep.subr.mxu0 0.0
    %1132 = vmatpush1.msra.mxu0 0.0
    %1133 = vmatprep.subr.mxu0 0.0
    %1134 = vmatpush1.msra.mxu0 0.0
    %1135 = vmatprep.subr.mxu0 0.0
    %1136 = vmatpush1.msra.mxu0 0.0
    %1137 = vmatprep.subr.mxu0 0.0
    %1138 = vmatpush1.msra.mxu0 0.0
    %1139 = vmatprep.subr.mxu0 0.0
    %1140 = vmatpush1.msra.mxu0 0.0
    %1141 = vmatprep.subr.mxu0 0.0
    %1142 = vmatpush1.msra.mxu0 0.0
    %1143 = vmatprep.subr.mxu0 0.0
    %1144 = vmatpush1.msra.mxu0 0.0
    %1145 = vmatprep.subr.mxu0 0.0
    %1146 = vmatpush1.msra.mxu0 0.0
    %1147 = vmatprep.subr.mxu0 0.0
    %1148 = vmatpush1.msra.mxu0 0.0
    %1149 = vmatprep.subr.mxu0 0.0
    %1150 = vmatpush1.msra.mxu0 0.0
    %1151 = vmatprep.subr.mxu0 0.0
    %1152 = vmatpush1.msra.mxu0 0.0
    %1153 = vmatprep.subr.mxu0 0.0
    %1154 = vmatpush1.msra.mxu0 0.0
    %1155 = vmatprep.subr.mxu0 0.0
    %1156 = vmatpush1.msra.mxu0 0.0
    %1157 = vmatprep.subr.mxu0 0.0
    %1158 = vmatpush1.msra.mxu0 0.0
    %1159 = vmatprep.subr.mxu0 0.0
    %1160 = vmatpush1.msra.mxu0 0.0
    %1161 = vmatprep.subr.mxu0 0.0
    %1162 = vmatpush1.msra.mxu0 0.0
    %1163 = vmatprep.subr.mxu0 0.0
    %1164 = vmatpush1.msra.mxu0 0.0
    %1165 = vmatprep.subr.mxu0 0.0
    %1166 = vmatpush1.msra.mxu0 0.0
    %1167 = vmatprep.subr.mxu0 0.0
    %1168 = vmatpush1.msra.mxu0 0.0
    %1169 = vmatprep.subr.mxu0 0.0
    %1170 = vmatpush1.msra.mxu0 0.0
    %1171 = vmatprep.subr.mxu0 0.0
    %1172 = vmatpush1.msra.mxu0 0.0
    %1173 = vmatprep.subr.mxu0 0.0
    %1174 = vmatpush1.msra.mxu0 0.0
    %1175 = vmatprep.mubr.f32.mxu0 0.0
    %1176 = vmatmul.mubr.f32.gmra.mrb[0].mxu0 %v1106
    %v1177 = vpop.f32.mrb[0].mxu0
    %v1178 = vadd.f32 %v1104, %v1177
    %v1179 = vpop.f32.mrb[0].mxu0
    %1180 = vmatprep.mubr.f32.mxu0 0.0
    %1181 = vmatmul.mubr.f32.gmra.mrb[0].mxu0 %v1109
    %v1182 = vpop.f32.mrb[0].mxu0
    %v1183 = vadd.f32 %v1104, %v1182
    %v1184 = vpop.f32.mrb[0].mxu0
    %1185 = vdwg.mxu0
    %1188 = vrot.lane.b32.xlu0 %v1178, 96
    %v1189 = vpop.permute.xlu0 %1188
    %1190 = vrot.lane.b32.xlu0 %v1183, 96
    %v1191 = vpop.permute.xlu0 %1190
    %v1192 = vsel %vm235, %v1178, 0
    %v1194 = vsel %vm235, %v1183, 0
    %v1196 = vsel %vm235, %v1189, 0
    %v1198 = vsel %vm235, %v1191, 0
    %1200 = vmatprep.subr.mxu0 0.0
    %1201 = vmatpush1.xpose.msra.mxu0 %v1196
    %1202 = vmatprep.subr.mxu0 0.0
    %1203 = vmatpush1.xpose.msra.mxu0 %v1198
    %1204 = vmatprep.subr.mxu0 0.0
    %1205 = vmatpush1.xpose.msra.mxu0 0.0
    %1206 = vmatprep.subr.mxu0 0.0
    %1207 = vmatpush1.xpose.msra.mxu0 0.0
    %1208 = vmatprep.subr.mxu0 0.0
    %1209 = vmatpush1.xpose.msra.mxu0 0.0
    %1210 = vmatprep.subr.mxu0 0.0
    %1211 = vmatpush1.xpose.msra.mxu0 0.0
    %1212 = vmatprep.subr.mxu0 0.0
    %1213 = vmatpush1.xpose.msra.mxu0 0.0
    %1214 = vmatprep.subr.mxu0 0.0
    %1215 = vmatpush1.xpose.msra.mxu0 0.0
    %1216 = vmatprep.subr.mxu0 0.0
    %1217 = vmatpush1.xpose.msra.mxu0 0.0
    %1218 = vmatprep.subr.mxu0 0.0
    %1219 = vmatpush1.xpose.msra.mxu0 0.0
    %1220 = vmatprep.subr.mxu0 0.0
    %1221 = vmatpush1.xpose.msra.mxu0 0.0
    %1222 = vmatprep.subr.mxu0 0.0
    %1223 = vmatpush1.xpose.msra.mxu0 0.0
    %1224 = vmatprep.subr.mxu0 0.0
    %1225 = vmatpush1.xpose.msra.mxu0 0.0
    %1226 = vmatprep.subr.mxu0 0.0
    %1227 = vmatpush1.xpose.msra.mxu0 0.0
    %1228 = vmatprep.subr.mxu0 0.0
    %1229 = vmatpush1.xpose.msra.mxu0 0.0
    %1230 = vmatprep.subr.mxu0 0.0
    %1231 = vmatpush1.xpose.msra.mxu0 0.0
    %1232 = vmatprep.subr.mxu0 0.0
    %1233 = vmatpush1.xpose.msra.mxu0 0.0
    %1234 = vmatprep.subr.mxu0 0.0
    %1235 = vmatpush1.xpose.msra.mxu0 0.0
    %1236 = vmatprep.subr.mxu0 0.0
    %1237 = vmatpush1.xpose.msra.mxu0 0.0
    %1238 = vmatprep.subr.mxu0 0.0
    %1239 = vmatpush1.xpose.msra.mxu0 0.0
    %1240 = vmatprep.subr.mxu0 0.0
    %1241 = vmatpush1.xpose.msra.mxu0 0.0
    %1242 = vmatprep.subr.mxu0 0.0
    %1243 = vmatpush1.xpose.msra.mxu0 0.0
    %1244 = vmatprep.subr.mxu0 0.0
    %1245 = vmatpush1.xpose.msra.mxu0 0.0
    %1246 = vmatprep.subr.mxu0 0.0
    %1247 = vmatpush1.xpose.msra.mxu0 0.0
    %1248 = vmatprep.subr.mxu0 0.0
    %1249 = vmatpush1.xpose.msra.mxu0 0.0
    %1250 = vmatprep.subr.mxu0 0.0
    %1251 = vmatpush1.xpose.msra.mxu0 0.0
    %1252 = vmatprep.subr.mxu0 0.0
    %1253 = vmatpush1.xpose.msra.mxu0 0.0
    %1254 = vmatprep.subr.mxu0 0.0
    %1255 = vmatpush1.xpose.msra.mxu0 0.0
    %1256 = vmatprep.subr.mxu0 0.0
    %1257 = vmatpush1.xpose.msra.mxu0 0.0
    %1258 = vmatprep.subr.mxu0 0.0
    %1259 = vmatpush1.xpose.msra.mxu0 0.0
    %1260 = vmatprep.subr.mxu0 0.0
    %1261 = vmatpush1.xpose.msra.mxu0 0.0
    %1262 = vmatprep.subr.mxu0 0.0
    %1263 = vmatpush1.xpose.msra.mxu0 0.0
    %1264 = vmatprep.mubr.f32.mxu0 0.0
    %1265 = vmatmul.mubr.f32.gmra.mrb[0].mxu0 %v1192
    %v1266 = vpop.f32.mrb[0].mxu0
    %v1267 = vadd.f32 0.0, %v1266
    %v1268 = vpop.f32.mrb[0].mxu0
    %1269 = vmatprep.mubr.f32.mxu0 0.0
    %1270 = vmatmul.mubr.f32.gmra.mrb[0].mxu0 %v1194
    %v1271 = vpop.f32.mrb[0].mxu0
    %v1272 = vadd.f32 0.0, %v1271
    %v1273 = vpop.f32.mrb[0].mxu0
    %1274 = vdwg.mxu0
    %v1275 = vmul.f32 %v1267, 0.25
    %v1276 = vmul.f32 %v1272, 0.25
    %v1277 = vadd.f32 %v1275, %v137
    %v1278 = vadd.f32 %v1276, %v138
    %v1279 = vsel %vm235, %v1277, -inf
    %1280 = vmax.xlane.f32.xlu0 %v1279
    %v1281 = vpop.xlane.xlu0 %1280
    %v1282 = vsel %vm235, %v1278, -inf
    %1283 = vmax.xlane.f32.xlu0 %v1282
    %v1284 = vpop.xlane.xlu0 %1283
    %v1285 = vsub.f32 %v1277, %v1281
    %v1286 = vsub.f32 %v1278, %v1284
    %v1287 = vmul.f32 %v1285, 1.442695
    %v1288 = vpow.pop %v1287
    %v1289 = vmul.f32 %v1286, 1.442695
    %v1290 = vpow.pop %v1289
    %v1291 = vsel %vm235, %v1288, 0.0
    %1292 = vadd.xlane.f32.xlu0 %v1291
    %v1293 = vpop.xlane.xlu0 %1292
    %v1294 = vsel %vm235, %v1290, 0.0
    %1295 = vadd.xlane.f32.xlu0 %v1294
    %v1296 = vpop.xlane.xlu0 %1295
    %v1297 = vrcp.pop %v1293
    %v1298 = vmul.f32 %v1288, %v1297
    %v1299 = vrcp.pop %v1296
    %v1300 = vmul.f32 %v1290, %v1299
    %1301 = vrot.lane.b32.xlu0 %v1178, 64
    %v1302 = vpop.permute.xlu0 %1301
    %1303 = vrot.lane.b32.xlu0 %v1183, 64
    %v1304 = vpop.permute.xlu0 %1303
    %v1308 = vsel %vm235, %v1298, 0
    %v1311 = vsel %vm235, %v1300, 0
    %1313 = vmatprep.subr.mxu0 0.0
    %1314 = vmatpush1.msra.mxu0 %v1302
    %1315 = vmatprep.subr.mxu0 0.0
    %1316 = vmatpush1.msra.mxu0 %v1304
    %1317 = vmatprep.subr.mxu0 0.0
    %1318 = vmatpush1.msra.mxu0 0.0
    %1319 = vmatprep.subr.mxu0 0.0
    %1320 = vmatpush1.msra.mxu0 0.0
    %1321 = vmatprep.subr.mxu0 0.0
    %1322 = vmatpush1.msra.mxu0 0.0
    %1323 = vmatprep.subr.mxu0 0.0
    %1324 = vmatpush1.msra.mxu0 0.0
    %1325 = vmatprep.subr.mxu0 0.0
    %1326 = vmatpush1.msra.mxu0 0.0
    %1327 = vmatprep.subr.mxu0 0.0
    %1328 = vmatpush1.msra.mxu0 0.0
    %1329 = vmatprep.subr.mxu0 0.0
    %1330 = vmatpush1.msra.mxu0 0.0
    %1331 = vmatprep.subr.mxu0 0.0
    %1332 = vmatpush1.msra.mxu0 0.0
    %1333 = vmatprep.subr.mxu0 0.0
    %1334 = vmatpush1.msra.mxu0 0.0
    %1335 = vmatprep.subr.mxu0 0.0
    %1336 = vmatpush1.msra.mxu0 0.0
    %1337 = vmatprep.subr.mxu0 0.0
    %1338 = vmatpush1.msra.mxu0 0.0
    %1339 = vmatprep.subr.mxu0 0.0
    %1340 = vmatpush1.msra.mxu0 0.0
    %1341 = vmatprep.subr.mxu0 0.0
    %1342 = vmatpush1.msra.mxu0 0.0
    %1343 = vmatprep.subr.mxu0 0.0
    %1344 = vmatpush1.msra.mxu0 0.0
    %1345 = vmatprep.subr.mxu0 0.0
    %1346 = vmatpush1.msra.mxu0 0.0
    %1347 = vmatprep.subr.mxu0 0.0
    %1348 = vmatpush1.msra.mxu0 0.0
    %1349 = vmatprep.subr.mxu0 0.0
    %1350 = vmatpush1.msra.mxu0 0.0
    %1351 = vmatprep.subr.mxu0 0.0
    %1352 = vmatpush1.msra.mxu0 0.0
    %1353 = vmatprep.subr.mxu0 0.0
    %1354 = vmatpush1.msra.mxu0 0.0
    %1355 = vmatprep.subr.mxu0 0.0
    %1356 = vmatpush1.msra.mxu0 0.0
    %1357 = vmatprep.subr.mxu0 0.0
    %1358 = vmatpush1.msra.mxu0 0.0
    %1359 = vmatprep.subr.mxu0 0.0
    %1360 = vmatpush1.msra.mxu0 0.0
    %1361 = vmatprep.subr.mxu0 0.0
    %1362 = vmatpush1.msra.mxu0 0.0
    %1363 = vmatprep.subr.mxu0 0.0
    %1364 = vmatpush1.msra.mxu0 0.0
    %1365 = vmatprep.subr.mxu0 0.0
    %1366 = vmatpush1.msra.mxu0 0.0
    %1367 = vmatprep.subr.mxu0 0.0
    %1368 = vmatpush1.msra.mxu0 0.0
    %1369 = vmatprep.subr.mxu0 0.0
    %1370 = vmatpush1.msra.mxu0 0.0
    %1371 = vmatprep.subr.mxu0 0.0
    %1372 = vmatpush1.msra.mxu0 0.0
    %1373 = vmatprep.subr.mxu0 0.0
    %1374 = vmatpush1.msra.mxu0 0.0
    %1375 = vmatprep.subr.mxu0 0.0
    %1376 = vmatpush1.msra.mxu0 0.0
    %1377 = vmatprep.mubr.f32.mxu0 0.0
    %1378 = vmatmul.mubr.f32.gmra.mrb[0].mxu0 %v1308
    %v1379 = vpop.f32.mrb[0].mxu0
    %v1380 = vadd.f32 0.0, %v1379
    %v1381 = vpop.f32.mrb[0].mxu0
    %1382 = vmatprep.mubr.f32.mxu0 0.0
    %1383 = vmatmul.mubr.f32.gmra.mrb[0].mxu0 %v1311
    %v1384 = vpop.f32.mrb[0].mxu0
    %v1385 = vadd.f32 0.0, %v1384
    %v1386 = vpop.f32.mrb[0].mxu0
    %1387 = vdwg.mxu0
    %v1388 = vld [vmem:[#allocation5 + $0xd0] sm:$0xff]
    %v1389 = vld [vmem:[#allocation5 + $0xd8] sm:$0xff]
    %1390 = vrot.lane.b32.xlu0 %v1178, 112
    %v1391 = vpop.permute.xlu0 %1390
    %1392 = vrot.lane.b32.xlu0 %v1183, 112
    %v1393 = vpop.permute.xlu0 %1392
    %1394 = vrot.lane.b32.xlu0 %v1178, 80
    %v1395 = vpop.permute.xlu0 %1394
    %1396 = vrot.lane.b32.xlu0 %v1183, 80
    %v1397 = vpop.permute.xlu0 %1396
    %v1398 = vsel %vm235, %v1391, 0
    %v1400 = vsel %vm235, %v1393, 0
    %v1402 = vsel %vm235, %v1395, 0
    %v1404 = vsel %vm235, %v1397, 0
    %1406 = vmatprep.subr.mxu0 0.0
    %1407 = vmatpush1.xpose.msra.mxu0 %v1402
    %1408 = vmatprep.subr.mxu0 0.0
    %1409 = vmatpush1.xpose.msra.mxu0 %v1404
    %1410 = vmatprep.subr.mxu0 0.0
    %1411 = vmatpush1.xpose.msra.mxu0 0.0
    %1412 = vmatprep.subr.mxu0 0.0
    %1413 = vmatpush1.xpose.msra.mxu0 0.0
    %1414 = vmatprep.subr.mxu0 0.0
    %1415 = vmatpush1.xpose.msra.mxu0 0.0
    %1416 = vmatprep.subr.mxu0 0.0
    %1417 = vmatpush1.xpose.msra.mxu0 0.0
    %1418 = vmatprep.subr.mxu0 0.0
    %1419 = vmatpush1.xpose.msra.mxu0 0.0
    %1420 = vmatprep.subr.mxu0 0.0
    %1421 = vmatpush1.xpose.msra.mxu0 0.0
    %1422 = vmatprep.subr.mxu0 0.0
    %1423 = vmatpush1.xpose.msra.mxu0 0.0
    %1424 = vmatprep.subr.mxu0 0.0
    %1425 = vmatpush1.xpose.msra.mxu0 0.0
    %1426 = vmatprep.subr.mxu0 0.0
    %1427 = vmatpush1.xpose.msra.mxu0 0.0
    %1428 = vmatprep.subr.mxu0 0.0
    %1429 = vmatpush1.xpose.msra.mxu0 0.0
    %1430 = vmatprep.subr.mxu0 0.0
    %1431 = vmatpush1.xpose.msra.mxu0 0.0
    %1432 = vmatprep.subr.mxu0 0.0
    %1433 = vmatpush1.xpose.msra.mxu0 0.0
    %1434 = vmatprep.subr.mxu0 0.0
    %1435 = vmatpush1.xpose.msra.mxu0 0.0
    %1436 = vmatprep.subr.mxu0 0.0
    %1437 = vmatpush1.xpose.msra.mxu0 0.0
    %1438 = vmatprep.subr.mxu0 0.0
    %1439 = vmatpush1.xpose.msra.mxu0 0.0
    %1440 = vmatprep.subr.mxu0 0.0
    %1441 = vmatpush1.xpose.msra.mxu0 0.0
    %1442 = vmatprep.subr.mxu0 0.0
    %1443 = vmatpush1.xpose.msra.mxu0 0.0
    %1444 = vmatprep.subr.mxu0 0.0
    %1445 = vmatpush1.xpose.msra.mxu0 0.0
    %1446 = vmatprep.subr.mxu0 0.0
    %1447 = vmatpush1.xpose.msra.mxu0 0.0
    %1448 = vmatprep.subr.mxu0 0.0
    %1449 = vmatpush1.xpose.msra.mxu0 0.0
    %1450 = vmatprep.subr.mxu0 0.0
    %1451 = vmatpush1.xpose.msra.mxu0 0.0
    %1452 = vmatprep.subr.mxu0 0.0
    %1453 = vmatpush1.xpose.msra.mxu0 0.0
    %1454 = vmatprep.subr.mxu0 0.0
    %1455 = vmatpush1.xpose.msra.mxu0 0.0
    %1456 = vmatprep.subr.mxu0 0.0
    %1457 = vmatpush1.xpose.msra.mxu0 0.0
    %1458 = vmatprep.subr.mxu0 0.0
    %1459 = vmatpush1.xpose.msra.mxu0 0.0
    %1460 = vmatprep.subr.mxu0 0.0
    %1461 = vmatpush1.xpose.msra.mxu0 0.0
    %1462 = vmatprep.subr.mxu0 0.0
    %1463 = vmatpush1.xpose.msra.mxu0 0.0
    %1464 = vmatprep.subr.mxu0 0.0
    %1465 = vmatpush1.xpose.msra.mxu0 0.0
    %1466 = vmatprep.subr.mxu0 0.0
    %1467 = vmatpush1.xpose.msra.mxu0 0.0
    %1468 = vmatprep.subr.mxu0 0.0
    %1469 = vmatpush1.xpose.msra.mxu0 0.0
    %1470 = vmatprep.mubr.f32.mxu0 0.0
    %1471 = vmatmul.mubr.f32.gmra.mrb[0].mxu0 %v1398
    %v1472 = vpop.f32.mrb[0].mxu0
    %v1473 = vadd.f32 0.0, %v1472
    %v1474 = vpop.f32.mrb[0].mxu0
    %1475 = vmatprep.mubr.f32.mxu0 0.0
    %1476 = vmatmul.mubr.f32.gmra.mrb[0].mxu0 %v1400
    %v1477 = vpop.f32.mrb[0].mxu0
    %v1478 = vadd.f32 0.0, %v1477
    %v1479 = vpop.f32.mrb[0].mxu0
    %1480 = vdwg.mxu0
    %v1481 = vmul.f32 %v1473, 0.25
    %v1482 = vmul.f32 %v1478, 0.25
    %v1483 = vadd.f32 %v1481, %v137
    %v1484 = vadd.f32 %v1482, %v138
    %v1485 = vsel %vm235, %v1483, -inf
    %1486 = vmax.xlane.f32.xlu0 %v1485
    %v1487 = vpop.xlane.xlu0 %1486
    %v1488 = vsel %vm235, %v1484, -inf
    %1489 = vmax.xlane.f32.xlu0 %v1488
    %v1490 = vpop.xlane.xlu0 %1489
    %v1491 = vsub.f32 %v1483, %v1487
    %v1492 = vsub.f32 %v1484, %v1490
    %v1493 = vmul.f32 %v1491, 1.442695
    %v1494 = vpow.pop %v1493
    %v1495 = vmul.f32 %v1492, 1.442695
    %v1496 = vpow.pop %v1495
    %v1497 = vsel %vm235, %v1494, 0.0
    %1498 = vadd.xlane.f32.xlu0 %v1497
    %v1499 = vpop.xlane.xlu0 %1498
    %v1500 = vsel %vm235, %v1496, 0.0
    %1501 = vadd.xlane.f32.xlu0 %v1500
    %v1502 = vpop.xlane.xlu0 %1501
    %v1503 = vrcp.pop %v1499
    %v1504 = vmul.f32 %v1494, %v1503
    %v1505 = vrcp.pop %v1502
    %v1506 = vmul.f32 %v1496, %v1505
    %1507 = vrot.lane.b32.xlu0 %v1178, 48
    %v1508 = vpop.permute.xlu0 %1507
    %1509 = vrot.lane.b32.xlu0 %v1183, 48
    %v1510 = vpop.permute.xlu0 %1509
    %v1514 = vsel %vm235, %v1504, 0
    %v1517 = vsel %vm235, %v1506, 0
    %1519 = vmatprep.subr.mxu0 0.0
    %1520 = vmatpush1.msra.mxu0 %v1508
    %1521 = vmatprep.subr.mxu0 0.0
    %1522 = vmatpush1.msra.mxu0 %v1510
    %1523 = vmatprep.subr.mxu0 0.0
    %1524 = vmatpush1.msra.mxu0 0.0
    %1525 = vmatprep.subr.mxu0 0.0
    %1526 = vmatpush1.msra.mxu0 0.0
    %1527 = vmatprep.subr.mxu0 0.0
    %1528 = vmatpush1.msra.mxu0 0.0
    %1529 = vmatprep.subr.mxu0 0.0
    %1530 = vmatpush1.msra.mxu0 0.0
    %1531 = vmatprep.subr.mxu0 0.0
    %1532 = vmatpush1.msra.mxu0 0.0
    %1533 = vmatprep.subr.mxu0 0.0
    %1534 = vmatpush1.msra.mxu0 0.0
    %1535 = vmatprep.subr.mxu0 0.0
    %1536 = vmatpush1.msra.mxu0 0.0
    %1537 = vmatprep.subr.mxu0 0.0
    %1538 = vmatpush1.msra.mxu0 0.0
    %1539 = vmatprep.subr.mxu0 0.0
    %1540 = vmatpush1.msra.mxu0 0.0
    %1541 = vmatprep.subr.mxu0 0.0
    %1542 = vmatpush1.msra.mxu0 0.0
    %1543 = vmatprep.subr.mxu0 0.0
    %1544 = vmatpush1.msra.mxu0 0.0
    %1545 = vmatprep.subr.mxu0 0.0
    %1546 = vmatpush1.msra.mxu0 0.0
    %1547 = vmatprep.subr.mxu0 0.0
    %1548 = vmatpush1.msra.mxu0 0.0
    %1549 = vmatprep.subr.mxu0 0.0
    %1550 = vmatpush1.msra.mxu0 0.0
    %1551 = vmatprep.subr.mxu0 0.0
    %1552 = vmatpush1.msra.mxu0 0.0
    %1553 = vmatprep.subr.mxu0 0.0
    %1554 = vmatpush1.msra.mxu0 0.0
    %1555 = vmatprep.subr.mxu0 0.0
    %1556 = vmatpush1.msra.mxu0 0.0
    %1557 = vmatprep.subr.mxu0 0.0
    %1558 = vmatpush1.msra.mxu0 0.0
    %1559 = vmatprep.subr.mxu0 0.0
    %1560 = vmatpush1.msra.mxu0 0.0
    %1561 = vmatprep.subr.mxu0 0.0
    %1562 = vmatpush1.msra.mxu0 0.0
    %1563 = vmatprep.subr.mxu0 0.0
    %1564 = vmatpush1.msra.mxu0 0.0
    %1565 = vmatprep.subr.mxu0 0.0
    %1566 = vmatpush1.msra.mxu0 0.0
    %1567 = vmatprep.subr.mxu0 0.0
    %1568 = vmatpush1.msra.mxu0 0.0
    %1569 = vmatprep.subr.mxu0 0.0
    %1570 = vmatpush1.msra.mxu0 0.0
    %1571 = vmatprep.subr.mxu0 0.0
    %1572 = vmatpush1.msra.mxu0 0.0
    %1573 = vmatprep.subr.mxu0 0.0
    %1574 = vmatpush1.msra.mxu0 0.0
    %1575 = vmatprep.subr.mxu0 0.0
    %1576 = vmatpush1.msra.mxu0 0.0
    %1577 = vmatprep.subr.mxu0 0.0
    %1578 = vmatpush1.msra.mxu0 0.0
    %1579 = vmatprep.subr.mxu0 0.0
    %1580 = vmatpush1.msra.mxu0 0.0
    %1581 = vmatprep.subr.mxu0 0.0
    %1582 = vmatpush1.msra.mxu0 0.0
    %1583 = vmatprep.mubr.f32.mxu0 0.0
    %1584 = vmatmul.mubr.f32.gmra.mrb[0].mxu0 %v1514
    %v1585 = vpop.f32.mrb[0].mxu0
    %v1586 = vadd.f32 0.0, %v1585
    %v1587 = vpop.f32.mrb[0].mxu0
    %1588 = vmatprep.mubr.f32.mxu0 0.0
    %1589 = vmatmul.mubr.f32.gmra.mrb[0].mxu0 %v1517
    %v1590 = vpop.f32.mrb[0].mxu0
    %v1591 = vadd.f32 0.0, %v1590
    %v1592 = vpop.f32.mrb[0].mxu0
    %1593 = vdwg.mxu0
    %v1594 = vld [vmem:[#allocation5 + $0xe0] sm:$0xff]
    %v1595 = vld [vmem:[#allocation5 + $0xe8] sm:$0xff]
    %v1597 = vsel %vm235, %v1586, 0
    %v1600 = vsel %vm235, %v1591, 0
    %1602 = vmatprep.subr.mxu0 0.0
    %1603 = vmatpush1.msra.mxu0 %v1594
    %1604 = vmatprep.subr.mxu0 0.0
    %1605 = vmatpush1.msra.mxu0 %v1595
    %1606 = vmatprep.subr.mxu0 0.0
    %1607 = vmatpush1.msra.mxu0 0.0
    %1608 = vmatprep.subr.mxu0 0.0
    %1609 = vmatpush1.msra.mxu0 0.0
    %1610 = vmatprep.subr.mxu0 0.0
    %1611 = vmatpush1.msra.mxu0 0.0
    %1612 = vmatprep.subr.mxu0 0.0
    %1613 = vmatpush1.msra.mxu0 0.0
    %1614 = vmatprep.subr.mxu0 0.0
    %1615 = vmatpush1.msra.mxu0 0.0
    %1616 = vmatprep.subr.mxu0 0.0
    %1617 = vmatpush1.msra.mxu0 0.0
    %1618 = vmatprep.subr.mxu0 0.0
    %1619 = vmatpush1.msra.mxu0 0.0
    %1620 = vmatprep.subr.mxu0 0.0
    %1621 = vmatpush1.msra.mxu0 0.0
    %1622 = vmatprep.subr.mxu0 0.0
    %1623 = vmatpush1.msra.mxu0 0.0
    %1624 = vmatprep.subr.mxu0 0.0
    %1625 = vmatpush1.msra.mxu0 0.0
    %1626 = vmatprep.subr.mxu0 0.0
    %1627 = vmatpush1.msra.mxu0 0.0
    %1628 = vmatprep.subr.mxu0 0.0
    %1629 = vmatpush1.msra.mxu0 0.0
    %1630 = vmatprep.subr.mxu0 0.0
    %1631 = vmatpush1.msra.mxu0 0.0
    %1632 = vmatprep.subr.mxu0 0.0
    %1633 = vmatpush1.msra.mxu0 0.0
    %1634 = vmatprep.subr.mxu0 0.0
    %1635 = vmatpush1.msra.mxu0 0.0
    %1636 = vmatprep.subr.mxu0 0.0
    %1637 = vmatpush1.msra.mxu0 0.0
    %1638 = vmatprep.subr.mxu0 0.0
    %1639 = vmatpush1.msra.mxu0 0.0
    %1640 = vmatprep.subr.mxu0 0.0
    %1641 = vmatpush1.msra.mxu0 0.0
    %1642 = vmatprep.subr.mxu0 0.0
    %1643 = vmatpush1.msra.mxu0 0.0
    %1644 = vmatprep.subr.mxu0 0.0
    %1645 = vmatpush1.msra.mxu0 0.0
    %1646 = vmatprep.subr.mxu0 0.0
    %1647 = vmatpush1.msra.mxu0 0.0
    %1648 = vmatprep.subr.mxu0 0.0
    %1649 = vmatpush1.msra.mxu0 0.0
    %1650 = vmatprep.subr.mxu0 0.0
    %1651 = vmatpush1.msra.mxu0 0.0
    %1652 = vmatprep.subr.mxu0 0.0
    %1653 = vmatpush1.msra.mxu0 0.0
    %1654 = vmatprep.subr.mxu0 0.0
    %1655 = vmatpush1.msra.mxu0 0.0
    %1656 = vmatprep.subr.mxu0 0.0
    %1657 = vmatpush1.msra.mxu0 0.0
    %1658 = vmatprep.subr.mxu0 0.0
    %1659 = vmatpush1.msra.mxu0 0.0
    %1660 = vmatprep.subr.mxu0 0.0
    %1661 = vmatpush1.msra.mxu0 0.0
    %1662 = vmatprep.subr.mxu0 0.0
    %1663 = vmatpush1.msra.mxu0 0.0
    %1664 = vmatprep.subr.mxu0 0.0
    %1665 = vmatpush1.msra.mxu0 0.0
    %1666 = vmatprep.mubr.f32.mxu0 0.0
    %1667 = vmatmul.mubr.f32.gmra.mrb[0].mxu0 %v1597
    %v1668 = vpop.f32.mrb[0].mxu0
    %v1669 = vadd.f32 0.0, %v1668
    %v1670 = vpop.f32.mrb[0].mxu0
    %1671 = vmatprep.mubr.f32.mxu0 0.0
    %1672 = vmatmul.mubr.f32.gmra.mrb[0].mxu0 %v1600
    %v1673 = vpop.f32.mrb[0].mxu0
    %v1674 = vadd.f32 0.0, %v1673
    %v1675 = vpop.f32.mrb[0].mxu0
    %1676 = vdwg.mxu0
    %v1678 = vsel %vm235, %v1380, 0
    %v1681 = vsel %vm235, %v1385, 0
    %1683 = vmatprep.subr.mxu0 0.0
    %1684 = vmatpush1.msra.mxu0 %v1388
    %1685 = vmatprep.subr.mxu0 0.0
    %1686 = vmatpush1.msra.mxu0 %v1389
    %1687 = vmatprep.subr.mxu0 0.0
    %1688 = vmatpush1.msra.mxu0 0.0
    %1689 = vmatprep.subr.mxu0 0.0
    %1690 = vmatpush1.msra.mxu0 0.0
    %1691 = vmatprep.subr.mxu0 0.0
    %1692 = vmatpush1.msra.mxu0 0.0
    %1693 = vmatprep.subr.mxu0 0.0
    %1694 = vmatpush1.msra.mxu0 0.0
    %1695 = vmatprep.subr.mxu0 0.0
    %1696 = vmatpush1.msra.mxu0 0.0
    %1697 = vmatprep.subr.mxu0 0.0
    %1698 = vmatpush1.msra.mxu0 0.0
    %1699 = vmatprep.subr.mxu0 0.0
    %1700 = vmatpush1.msra.mxu0 0.0
    %1701 = vmatprep.subr.mxu0 0.0
    %1702 = vmatpush1.msra.mxu0 0.0
    %1703 = vmatprep.subr.mxu0 0.0
    %1704 = vmatpush1.msra.mxu0 0.0
    %1705 = vmatprep.subr.mxu0 0.0
    %1706 = vmatpush1.msra.mxu0 0.0
    %1707 = vmatprep.subr.mxu0 0.0
    %1708 = vmatpush1.msra.mxu0 0.0
    %1709 = vmatprep.subr.mxu0 0.0
    %1710 = vmatpush1.msra.mxu0 0.0
    %1711 = vmatprep.subr.mxu0 0.0
    %1712 = vmatpush1.msra.mxu0 0.0
    %1713 = vmatprep.subr.mxu0 0.0
    %1714 = vmatpush1.msra.mxu0 0.0
    %1715 = vmatprep.subr.mxu0 0.0
    %1716 = vmatpush1.msra.mxu0 0.0
    %1717 = vmatprep.subr.mxu0 0.0
    %1718 = vmatpush1.msra.mxu0 0.0
    %1719 = vmatprep.subr.mxu0 0.0
    %1720 = vmatpush1.msra.mxu0 0.0
    %1721 = vmatprep.subr.mxu0 0.0
    %1722 = vmatpush1.msra.mxu0 0.0
    %1723 = vmatprep.subr.mxu0 0.0
    %1724 = vmatpush1.msra.mxu0 0.0
    %1725 = vmatprep.subr.mxu0 0.0
    %1726 = vmatpush1.msra.mxu0 0.0
    %1727 = vmatprep.subr.mxu0 0.0
    %1728 = vmatpush1.msra.mxu0 0.0
    %1729 = vmatprep.subr.mxu0 0.0
    %1730 = vmatpush1.msra.mxu0 0.0
    %1731 = vmatprep.subr.mxu0 0.0
    %1732 = vmatpush1.msra.mxu0 0.0
    %1733 = vmatprep.subr.mxu0 0.0
    %1734 = vmatpush1.msra.mxu0 0.0
    %1735 = vmatprep.subr.mxu0 0.0
    %1736 = vmatpush1.msra.mxu0 0.0
    %1737 = vmatprep.subr.mxu0 0.0
    %1738 = vmatpush1.msra.mxu0 0.0
    %1739 = vmatprep.subr.mxu0 0.0
    %1740 = vmatpush1.msra.mxu0 0.0
    %1741 = vmatprep.subr.mxu0 0.0
    %1742 = vmatpush1.msra.mxu0 0.0
    %1743 = vmatprep.subr.mxu0 0.0
    %1744 = vmatpush1.msra.mxu0 0.0
    %1745 = vmatprep.subr.mxu0 0.0
    %1746 = vmatpush1.msra.mxu0 0.0
    %1747 = vmatprep.mubr.f32.mxu0 0.0
    %1748 = vmatmul.mubr.f32.gmra.mrb[0].mxu0 %v1678
    %v1749 = vpop.f32.mrb[0].mxu0
    %v1750 = vadd.f32 %v1669, %v1749
    %v1751 = vpop.f32.mrb[0].mxu0
    %1752 = vmatprep.mubr.f32.mxu0 0.0
    %1753 = vmatmul.mubr.f32.gmra.mrb[0].mxu0 %v1681
    %v1754 = vpop.f32.mrb[0].mxu0
    %v1755 = vadd.f32 %v1674, %v1754
    %v1756 = vpop.f32.mrb[0].mxu0
    %1757 = vdwg.mxu0
    %v1758 = vld [vmem:[#allocation5 + $0x151] sm:$0x1]
    %v1759 = vlaneseq
    %v1760 = vshrl.u32 %v1759, 7
    %v1761 = vsub.s32 0, %v1760
    %v1762 = vrot.slane %v1758, %v1761
    %v1763 = vadd.f32 %v1750, %v1762
    %v1764 = vadd.f32 %v1755, %v1762
    %v1765 = vadd.f32 %v1094, %v1763
    %v1766 = vadd.f32 %v1095, %v1764
    %v1767 = vld [vmem:[#allocation5 + $0x152] sm:$0x1]
    %v1768 = vld [vmem:[#allocation5 + $0x153] sm:$0x1]
    %v1769 = vsel %vm47, %v1765, 0.0
    %1770 = vadd.xlane.f32.xlu0 %v1769
    %v1771 = vpop.xlane.xlu0 %1770
    %v1772 = vsel %vm47, %v1766, 0.0
    %1773 = vadd.xlane.f32.xlu0 %v1772
    %v1774 = vpop.xlane.xlu0 %1773
    %v1775 = vmul.f32 %v1771, %v54
    %v1776 = vmul.f32 %v1774, %v54
    %v1777 = vsub.f32 %v1765, %v1775
    %v1778 = vsub.f32 %v1766, %v1776
    %v1779 = vmul.f32 %v1777, %v1777
    %v1780 = vmul.f32 %v1778, %v1778
    %v1781 = vsel %vm47, %v1779, 0.0
    %1782 = vadd.xlane.f32.xlu0 %v1781
    %v1783 = vpop.xlane.xlu0 %1782
    %v1784 = vsel %vm47, %v1780, 0.0
    %1785 = vadd.xlane.f32.xlu0 %v1784
    %v1786 = vpop.xlane.xlu0 %1785
    %v1787 = vmul.f32 %v1783, %v54
    %v1788 = vmul.f32 %v1786, %v54
    %v1789 = vadd.f32 %v1787, 1e-12
    %v1790 = vadd.f32 %v1788, 1e-12
    %v1791 = vrsqrt.pop %v1789
    %v1792 = vrsqrt.pop %v1790
    %v1793 = vmul.f32 %v1777, %v1791
    %v1794 = vmul.f32 %v1778, %v1792
    %v1795 = vlaneseq
    %v1796 = vshrl.u32 %v1795, 7
    %v1797 = vsub.s32 0, %v1796
    %v1798 = vrot.slane %v1767, %v1797
    %v1799 = vmul.f32 %v1793, %v1798
    %v1800 = vmul.f32 %v1794, %v1798
    %v1801 = vlaneseq
    %v1802 = vshrl.u32 %v1801, 7
    %v1803 = vsub.s32 0, %v1802
    %v1804 = vrot.slane %v1768, %v1803
    %v1805 = vadd.f32 %v1799, %v1804
    %v1806 = vadd.f32 %v1800, %v1804
    %v1807 = vld [vmem:[#allocation5 + $0xf0] sm:$0xff]
    %v1808 = vld [vmem:[#allocation5 + $0xf8] sm:$0xff]
    %v1809 = vld [vmem:[#allocation5 + $0x100] sm:$0xff]
    %v1810 = vld [vmem:[#allocation5 + $0x108] sm:$0xff]
    %v1811 = vld [vmem:[#allocation5 + $0x154] sm:$0x1]
    %v1812 = vlaneseq
    %v1813 = vshrl.u32 %v1812, 7
    %v1814 = vsub.s32 0, %v1813
    %v1815 = vrot.slane %v1811, %v1814
    %v1817 = vsel %vm47, %v1805, 0
    %v1820 = vsel %vm47, %v1806, 0
    %1822 = vmatprep.subr.mxu0 0.0
    %1823 = vmatpush1.msra.mxu0 %v1807
    %1824 = vmatprep.subr.mxu0 0.0
    %1825 = vmatpush1.msra.mxu0 %v1808
    %1826 = vmatprep.subr.mxu0 0.0
    %1827 = vmatpush1.msra.mxu0 %v1809
    %1828 = vmatprep.subr.mxu0 0.0
    %1829 = vmatpush1.msra.mxu0 %v1810
    %1830 = vmatprep.subr.mxu0 0.0
    %1831 = vmatpush1.msra.mxu0 0.0
    %1832 = vmatprep.subr.mxu0 0.0
    %1833 = vmatpush1.msra.mxu0 0.0
    %1834 = vmatprep.subr.mxu0 0.0
    %1835 = vmatpush1.msra.mxu0 0.0
    %1836 = vmatprep.subr.mxu0 0.0
    %1837 = vmatpush1.msra.mxu0 0.0
    %1838 = vmatprep.subr.mxu0 0.0
    %1839 = vmatpush1.msra.mxu0 0.0
    %1840 = vmatprep.subr.mxu0 0.0
    %1841 = vmatpush1.msra.mxu0 0.0
    %1842 = vmatprep.subr.mxu0 0.0
    %1843 = vmatpush1.msra.mxu0 0.0
    %1844 = vmatprep.subr.mxu0 0.0
    %1845 = vmatpush1.msra.mxu0 0.0
    %1846 = vmatprep.subr.mxu0 0.0
    %1847 = vmatpush1.msra.mxu0 0.0
    %1848 = vmatprep.subr.mxu0 0.0
    %1849 = vmatpush1.msra.mxu0 0.0
    %1850 = vmatprep.subr.mxu0 0.0
    %1851 = vmatpush1.msra.mxu0 0.0
    %1852 = vmatprep.subr.mxu0 0.0
    %1853 = vmatpush1.msra.mxu0 0.0
    %1854 = vmatprep.subr.mxu0 0.0
    %1855 = vmatpush1.msra.mxu0 0.0
    %1856 = vmatprep.subr.mxu0 0.0
    %1857 = vmatpush1.msra.mxu0 0.0
    %1858 = vmatprep.subr.mxu0 0.0
    %1859 = vmatpush1.msra.mxu0 0.0
    %1860 = vmatprep.subr.mxu0 0.0
    %1861 = vmatpush1.msra.mxu0 0.0
    %1862 = vmatprep.subr.mxu0 0.0
    %1863 = vmatpush1.msra.mxu0 0.0
    %1864 = vmatprep.subr.mxu0 0.0
    %1865 = vmatpush1.msra.mxu0 0.0
    %1866 = vmatprep.subr.mxu0 0.0
    %1867 = vmatpush1.msra.mxu0 0.0
    %1868 = vmatprep.subr.mxu0 0.0
    %1869 = vmatpush1.msra.mxu0 0.0
    %1870 = vmatprep.subr.mxu0 0.0
    %1871 = vmatpush1.msra.mxu0 0.0
    %1872 = vmatprep.subr.mxu0 0.0
    %1873 = vmatpush1.msra.mxu0 0.0
    %1874 = vmatprep.subr.mxu0 0.0
    %1875 = vmatpush1.msra.mxu0 0.0
    %1876 = vmatprep.subr.mxu0 0.0
    %1877 = vmatpush1.msra.mxu0 0.0
    %1878 = vmatprep.subr.mxu0 0.0
    %1879 = vmatpush1.msra.mxu0 0.0
    %1880 = vmatprep.subr.mxu0 0.0
    %1881 = vmatpush1.msra.mxu0 0.0
    %1882 = vmatprep.subr.mxu0 0.0
    %1883 = vmatpush1.msra.mxu0 0.0
    %1884 = vmatprep.subr.mxu0 0.0
    %1885 = vmatpush1.msra.mxu0 0.0
    %1886 = vmatprep.mubr.f32.mxu0 0.0
    %1887 = vmatmul.mubr.f32.gmra.mrb[0].mxu0 %v1817
    %v1888 = vpop.f32.mrb[0].mxu0
    %v1889 = vadd.f32 %v1815, %v1888
    %v1890 = vpop.f32.mrb[0].mxu0
    %1891 = vmatprep.mubr.f32.mxu0 0.0
    %1892 = vmatmul.mubr.f32.gmra.mrb[0].mxu0 %v1820
    %v1893 = vpop.f32.mrb[0].mxu0
    %v1894 = vadd.f32 %v1815, %v1893
    %v1895 = vpop.f32.mrb[0].mxu0
    %1896 = vdwg.mxu0
    %v1897 = vmul.f32 %v1889, %v1889
    %v1898 = vmul.f32 %v1894, %v1894
    %v1899 = vmul.f32 %v1889, %v1897
    %v1900 = vmul.f32 %v1894, %v1898
    %v1901 = vmul.f32 %v1899, 0.044715
    %v1902 = vmul.f32 %v1900, 0.044715
    %v1903 = vadd.f32 %v1889, %v1901
    %v1904 = vadd.f32 %v1894, %v1902
    %v1905 = vmul.f32 %v1903, 0.7978846
    %v1906 = vmul.f32 %v1904, 0.7978846
    %v1907 = vtanh.pop %v1905
    %v1908 = vtanh.pop %v1906
    %v1909 = vadd.f32 %v1907, 1.0
    %v1910 = vadd.f32 %v1908, 1.0
    %v1911 = vmul.f32 %v1909, 0.5
    %v1912 = vmul.f32 %v1910, 0.5
    %v1913 = vmul.f32 %v1889, %v1911
    %v1914 = vmul.f32 %v1894, %v1912
    %v1915 = vld [vmem:[#allocation5 + $0x110] sm:$0xff]
    %v1916 = vld [vmem:[#allocation5 + $0x118] sm:$0xff]
    %v1917 = vld [vmem:[#allocation5 + $0x120] sm:$0xff]
    %v1918 = vld [vmem:[#allocation5 + $0x128] sm:$0xff]
    %v1919 = vld [vmem:[#allocation5 + $0x130] sm:$0xff]
    %v1920 = vld [vmem:[#allocation5 + $0x138] sm:$0xff]
    %v1921 = vld [vmem:[#allocation5 + $0x140] sm:$0xff]
    %v1922 = vld [vmem:[#allocation5 + $0x148] sm:$0xff]
    %v1923 = vld [vmem:[#allocation5 + $0x155] sm:$0x1]
    %v1924 = vlaneseq
    %v1925 = vshrl.u32 %v1924, 7
    %v1926 = vsub.s32 0, %v1925
    %v1927 = vrot.slane %v1923, %v1926
    %v1929 = vsel %vm972, %v1913, 0
    %v1932 = vsel %vm972, %v1914, 0
    %1934 = vmatprep.subr.mxu0 0.0
    %1935 = vmatpush1.msra.mxu0 %v1915
    %1936 = vmatprep.subr.mxu0 0.0
    %1937 = vmatpush1.msra.mxu0 %v1916
    %1938 = vmatprep.subr.mxu0 0.0
    %1939 = vmatpush1.msra.mxu0 %v1917
    %1940 = vmatprep.subr.mxu0 0.0
    %1941 = vmatpush1.msra.mxu0 %v1918
    %1942 = vmatprep.subr.mxu0 0.0
    %1943 = vmatpush1.msra.mxu0 %v1919
    %1944 = vmatprep.subr.mxu0 0.0
    %1945 = vmatpush1.msra.mxu0 %v1920
    %1946 = vmatprep.subr.mxu0 0.0
    %1947 = vmatpush1.msra.mxu0 %v1921
    %1948 = vmatprep.subr.mxu0 0.0
    %1949 = vmatpush1.msra.mxu0 %v1922
    %1950 = vmatprep.subr.mxu0 0.0
    %1951 = vmatpush1.msra.mxu0 0.0
    %1952 = vmatprep.subr.mxu0 0.0
    %1953 = vmatpush1.msra.mxu0 0.0
    %1954 = vmatprep.subr.mxu0 0.0
    %1955 = vmatpush1.msra.mxu0 0.0
    %1956 = vmatprep.subr.mxu0 0.0
    %1957 = vmatpush1.msra.mxu0 0.0
    %1958 = vmatprep.subr.mxu0 0.0
    %1959 = vmatpush1.msra.mxu0 0.0
    %1960 = vmatprep.subr.mxu0 0.0
    %1961 = vmatpush1.msra.mxu0 0.0
    %1962 = vmatprep.subr.mxu0 0.0
    %1963 = vmatpush1.msra.mxu0 0.0
    %1964 = vmatprep.subr.mxu0 0.0
    %1965 = vmatpush1.msra.mxu0 0.0
    %1966 = vmatprep.subr.mxu0 0.0
    %1967 = vmatpush1.msra.mxu0 0.0
    %1968 = vmatprep.subr.mxu0 0.0
    %1969 = vmatpush1.msra.mxu0 0.0
    %1970 = vmatprep.subr.mxu0 0.0
    %1971 = vmatpush1.msra.mxu0 0.0
    %1972 = vmatprep.subr.mxu0 0.0
    %1973 = vmatpush1.msra.mxu0 0.0
    %1974 = vmatprep.subr.mxu0 0.0
    %1975 = vmatpush1.msra.mxu0 0.0
    %1976 = vmatprep.subr.mxu0 0.0
    %1977 = vmatpush1.msra.mxu0 0.0
    %1978 = vmatprep.subr.mxu0 0.0
    %1979 = vmatpush1.msra.mxu0 0.0
    %1980 = vmatprep.subr.mxu0 0.0
    %1981 = vmatpush1.msra.mxu0 0.0
    %1982 = vmatprep.subr.mxu0 0.0
    %1983 = vmatpush1.msra.mxu0 0.0
    %1984 = vmatprep.subr.mxu0 0.0
    %1985 = vmatpush1.msra.mxu0 0.0
    %1986 = vmatprep.subr.mxu0 0.0
    %1987 = vmatpush1.msra.mxu0 0.0
    %1988 = vmatprep.subr.mxu0 0.0
    %1989 = vmatpush1.msra.mxu0 0.0
    %1990 = vmatprep.subr.mxu0 0.0
    %1991 = vmatpush1.msra.mxu0 0.0
    %1992 = vmatprep.subr.mxu0 0.0
    %1993 = vmatpush1.msra.mxu0 0.0
    %1994 = vmatprep.subr.mxu0 0.0
    %1995 = vmatpush1.msra.mxu0 0.0
    %1996 = vmatprep.subr.mxu0 0.0
    %1997 = vmatpush1.msra.mxu0 0.0
    %1998 = vmatprep.mubr.f32.mxu0 0.0
    %1999 = vmatmul.mubr.f32.gmra.mrb[0].mxu0 %v1929
    %v2000 = vpop.f32.mrb[0].mxu0
    %v2001 = vadd.f32 %v1927, %v2000
    %v2002 = vpop.f32.mrb[0].mxu0
    %2003 = vmatprep.mubr.f32.mxu0 0.0
    %2004 = vmatmul.mubr.f32.gmra.mrb[0].mxu0 %v1932
    %v2005 = vpop.f32.mrb[0].mxu0
    %v2006 = vadd.f32 %v1927, %v2005
    %v2007 = vpop.f32.mrb[0].mxu0
    %2008 = vdwg.mxu0
    %v2009 = vadd.f32 %v1805, %v2001
    %v2010 = vadd.f32 %v1806, %v2006
    %v2011 = vld [vmem:[#allocation5 + $0x156] sm:$0x1]
    %v2012 = vld [vmem:[#allocation5 + $0x157] sm:$0x1]
    %v2013 = vsel %vm47, %v2009, 0.0
    %2014 = vadd.xlane.f32.xlu0 %v2013
    %v2015 = vpop.xlane.xlu0 %2014
    %v2016 = vsel %vm47, %v2010, 0.0
    %2017 = vadd.xlane.f32.xlu0 %v2016
    %v2018 = vpop.xlane.xlu0 %2017
    %v2019 = vmul.f32 %v2015, %v54
    %v2020 = vmul.f32 %v2018, %v54
    %v2021 = vsub.f32 %v2009, %v2019
    %v2022 = vsub.f32 %v2010, %v2020
    %v2023 = vmul.f32 %v2021, %v2021
    %v2024 = vmul.f32 %v2022, %v2022
    %v2025 = vsel %vm47, %v2023, 0.0
    %2026 = vadd.xlane.f32.xlu0 %v2025
    %v2027 = vpop.xlane.xlu0 %2026
    %v2028 = vsel %vm47, %v2024, 0.0
    %2029 = vadd.xlane.f32.xlu0 %v2028
    %v2030 = vpop.xlane.xlu0 %2029
    %v2031 = vmul.f32 %v2027, %v54
    %v2032 = vmul.f32 %v2030, %v54
    %v2033 = vadd.f32 %v2031, 1e-12
    %v2034 = vadd.f32 %v2032, 1e-12
    %v2035 = vrsqrt.pop %v2033
    %v2036 = vrsqrt.pop %v2034
    %v2037 = vmul.f32 %v2021, %v2035
    %v2038 = vmul.f32 %v2022, %v2036
    %v2039 = vlaneseq
    %v2040 = vshrl.u32 %v2039, 7
    %v2041 = vsub.s32 0, %v2040
    %v2042 = vrot.slane %v2011, %v2041
    %v2043 = vmul.f32 %v2037, %v2042
    %v2044 = vmul.f32 %v2038, %v2042
    %v2045 = vlaneseq
    %v2046 = vshrl.u32 %v2045, 7
    %v2047 = vsub.s32 0, %v2046
    %v2048 = vrot.slane %v2012, %v2047
    %v2049 = vadd.f32 %v2043, %v2048
    %v2050 = vadd.f32 %v2044, %v2048
    %v2051 = vmul.u32 %v91, 8
    %vm2052 = vcmp.eq.s32.totalorder %v94, %v2051
    %v2053 = vsel %vm2052, 1, 0
    %v2054 = vcvt.s32.f32 %v2053
    %v2056 = vsel %vm235, %v2054, 0
    %2058 = vmatprep.subr.mxu0 0.0
    %2059 = vmatpush1.msra.mxu0 %v2049
    %2060 = vmatprep.subr.mxu0 0.0
    %2061 = vmatpush1.msra.mxu0 %v2050
    %2062 = vmatprep.subr.mxu0 0.0
    %2063 = vmatpush1.msra.mxu0 0.0
    %2064 = vmatprep.subr.mxu0 0.0
    %2065 = vmatpush1.msra.mxu0 0.0
    %2066 = vmatprep.subr.mxu0 0.0
    %2067 = vmatpush1.msra.mxu0 0.0
    %2068 = vmatprep.subr.mxu0 0.0
    %2069 = vmatpush1.msra.mxu0 0.0
    %2070 = vmatprep.subr.mxu0 0.0
    %2071 = vmatpush1.msra.mxu0 0.0
    %2072 = vmatprep.subr.mxu0 0.0
    %2073 = vmatpush1.msra.mxu0 0.0
    %2074 = vmatprep.subr.mxu0 0.0
    %2075 = vmatpush1.msra.mxu0 0.0
    %2076 = vmatprep.subr.mxu0 0.0
    %2077 = vmatpush1.msra.mxu0 0.0
    %2078 = vmatprep.subr.mxu0 0.0
    %2079 = vmatpush1.msra.mxu0 0.0
    %2080 = vmatprep.subr.mxu0 0.0
    %2081 = vmatpush1.msra.mxu0 0.0
    %2082 = vmatprep.subr.mxu0 0.0
    %2083 = vmatpush1.msra.mxu0 0.0
    %2084 = vmatprep.subr.mxu0 0.0
    %2085 = vmatpush1.msra.mxu0 0.0
    %2086 = vmatprep.subr.mxu0 0.0
    %2087 = vmatpush1.msra.mxu0 0.0
    %2088 = vmatprep.subr.mxu0 0.0
    %2089 = vmatpush1.msra.mxu0 0.0
    %2090 = vmatprep.subr.mxu0 0.0
    %2091 = vmatpush1.msra.mxu0 0.0
    %2092 = vmatprep.subr.mxu0 0.0
    %2093 = vmatpush1.msra.mxu0 0.0
    %2094 = vmatprep.subr.mxu0 0.0
    %2095 = vmatpush1.msra.mxu0 0.0
    %2096 = vmatprep.subr.mxu0 0.0
    %2097 = vmatpush1.msra.mxu0 0.0
    %2098 = vmatprep.subr.mxu0 0.0
    %2099 = vmatpush1.msra.mxu0 0.0
    %2100 = vmatprep.subr.mxu0 0.0
    %2101 = vmatpush1.msra.mxu0 0.0
    %2102 = vmatprep.subr.mxu0 0.0
    %2103 = vmatpush1.msra.mxu0 0.0
    %2104 = vmatprep.subr.mxu0 0.0
    %2105 = vmatpush1.msra.mxu0 0.0
    %2106 = vmatprep.subr.mxu0 0.0
    %2107 = vmatpush1.msra.mxu0 0.0
    %2108 = vmatprep.subr.mxu0 0.0
    %2109 = vmatpush1.msra.mxu0 0.0
    %2110 = vmatprep.subr.mxu0 0.0
    %2111 = vmatpush1.msra.mxu0 0.0
    %2112 = vmatprep.subr.mxu0 0.0
    %2113 = vmatpush1.msra.mxu0 0.0
    %2114 = vmatprep.subr.mxu0 0.0
    %2115 = vmatpush1.msra.mxu0 0.0
    %2116 = vmatprep.subr.mxu0 0.0
    %2117 = vmatpush1.msra.mxu0 0.0
    %2118 = vmatprep.subr.mxu0 0.0
    %2119 = vmatpush1.msra.mxu0 0.0
    %2120 = vmatprep.subr.mxu0 0.0
    %2121 = vmatpush1.msra.mxu0 0.0
    %2122 = vmatprep.mubr.f32.mxu0 0.0
    %2123 = vmatmul.mubr.f32.gmra.mrb[0].mxu0 %v2056
    %v2124 = vpop.f32.mrb[0].mxu0
    %v2125 = vadd.f32 0.0, %v2124
    %v2126 = vpop.f32.mrb[0].mxu0
    %2127 = vdwg.mxu0
    %vm2128 = vcmask 254976
    %2129 = vst.msk [vmem:[#allocation7] sm:$0x3] %vm2128, %v2125
    // Predicated region
    $region22: #{tpu_custom_call.1} parent=1 // pred_check
      _
    $region23: #{tpu_custom_call.1} parent=1 // pred_check_branch
      %2131 = sbr.rel (0) target = $region25
    $region24: #{tpu_custom_call.1} parent=1 // pred_region
      %s2133 = ssub.s32 32, 32
      %2134 = vsyncadd [#allocation4], %s2133
      %s2136 = sshll.u32 [#allocation7], 4
      %s2137 = int_to_ptr.vmem [resolvable:$true] %s2136
      %2139 = dma.vmem_to_hbm [thread:$0]  %s2137, 32, %s3, [#allocation4]
    $region25: #{tpu_custom_call.1} parent=1 // pred_fallthru
      _
    // Predicated region
    $region26: #{tpu_custom_call.1} parent=1 // pred_check
      _
    $region27: #{tpu_custom_call.1} parent=1 // pred_check_branch
      %2141 = sbr.rel (0) target = $region29
    $region28: #{tpu_custom_call.1} parent=1 // pred_region
      %2142 = dma.done [#allocation4], 32
    $region29: #{tpu_custom_call.1} parent=1 // pred_fallthru
      _
    %2143 = vsyncpa [#allocation3], 1
    %2144 = vsyncpa [#allocation6], 1
    %2145 = vsyncpa [#allocation4], 1

</llo_original>
